<compile_context>
chip_gen: v7x
topology: tpu7x:2x2x1
jax: 0.10.0
libtpu: 0.0.40
codegen_flags: <defaults>
</compile_context>

<pallas_src>
import functools

import jax
import jax.numpy as jnp
import numpy as np
from jax.experimental import pallas as pl
from jax.experimental.pallas import tpu as pltpu

PAD_IDX = 0

# ---- problem sizes (small, consistent with the module) ----
B = 2          # real batch
S = 8          # encoder sequence length
V = 64         # vocab size
E = 32         # emb_size  (== H so per-layer W_ih can be stacked)
H = 32         # hid_size  (== ctx_size for 'dot' attention)
L = 2          # n_layers
T = 4          # decode steps fused into a single kernel launch

BP = 8         # batch padded to a full sublane tile
VP = 128       # vocab padded to a full lane tile


# ---------------------------------------------------------------------------
# Pallas kernel: T fused attentional-decoder steps (state carried in VMEM)
# ---------------------------------------------------------------------------
def _attn_seq_decoder_kernel(
    tok_ref,        # SMEM (T, BP) int32  scalar-prefetched previous-token ids
    emb_ref,        # (V, E)              embedding table (padding row is zero)
    h0_ref,         # (L, BP, H)
    c0_ref,         # (L, BP, H)
    enc_ref,        # (BP, S, C)
    w_ih_t_ref,     # (L, E, 4H)          pre-transposed LSTM input weights
    w_hh_t_ref,     # (L, H, 4H)          pre-transposed LSTM hidden weights
    b_ref,          # (L, 1, 4H)          b_ih + b_hh
    merge_w_t_ref,  # (H + C, H)
    merge_b_ref,    # (1, H)
    gen_w_t_ref,    # (H, VP)             vocab padded to 128 lanes
    gen_b_ref,      # (1, VP)             pad lanes = -1e30
    step_ref,       # out block (1, 2*BP, VP): rows 0:BP log-probs, BP:2BP attn
    h_out_ref,      # out (L, BP, H)      doubles as the carried h state
    c_out_ref,      # out (L, BP, H)      doubles as the carried c state
    *,
    n_layers: int,
    hid: int,
    bp: int,
    seq: int,
    vocab_pad: int,
):
    t = pl.program_id(0)

    # initialize the carried state from the provided last_hidden on step 0
    @pl.when(t == 0)
    def _():
        h_out_ref[...] = h0_ref[...]
        c_out_ref[...] = c0_ref[...]

    # ---- embedding gather for this step (padding_idx row of the table is 0) ----
    rows = [emb_ref[pl.ds(tok_ref[t, b], 1), :] for b in range(bp)]   # bp x (1, E)
    x = jnp.concatenate(rows, axis=0)                                 # (BP, E)
    # TODO(synk): nn.Dropout on the embedding is identity (eval-mode semantics).

    # ---- stacked LSTM, single timestep (inter-layer dropout = identity) ----
    for l in range(n_layers):
        h = h_out_ref[l]                                              # (BP, H)
        c = c_out_ref[l]                                              # (BP, H)
        gates = (
            jnp.dot(x, w_ih_t_ref[l], preferred_element_type=jnp.float32)
            + jnp.dot(h, w_hh_t_ref[l], preferred_element_type=jnp.float32)
            + b_ref[l]
        )                                                             # (BP, 4H)
        # one full-width sigmoid + one full-width tanh, then static slices
        sig = jax.nn.sigmoid(gates)
        tnh = jnp.tanh(gates)
        i_g = sig[:, 0 * hid:1 * hid]
        f_g = sig[:, 1 * hid:2 * hid]
        g_g = tnh[:, 2 * hid:3 * hid]
        o_g = sig[:, 3 * hid:4 * hid]
        c_new = f_g * c + i_g * g_g
        h_new = o_g * jnp.tanh(c_new)
        h_out_ref[l] = h_new
        c_out_ref[l] = c_new
        x = h_new

    rnn_out = x                                                       # (BP, H)
    enc = enc_ref[...]                                                # (BP, S, C)

    # ---- dot attention on the MXU (batched matmul, q-tile of 1) ----
    scores = jnp.einsum(
        "bqd,bkd->bqk", rnn_out[:, None, :], enc,
        preferred_element_type=jnp.float32)[:, 0, :]                  # (BP, S)
    scores = scores - jnp.max(scores, axis=1, keepdims=True)
    e = jnp.exp(scores)
    attn = e / jnp.sum(e, axis=1, keepdims=True)                      # (BP, S)

    # ---- context = attn.bmm(enc) on the MXU ----
    context = jnp.einsum(
        "bqk,bkd->bqd", attn[:, None, :], enc,
        preferred_element_type=jnp.float32)[:, 0, :]                  # (BP, C)

    # ---- merge: tanh(Linear(cat(rnn_out, context))) ----
    concat = jnp.concatenate([rnn_out, context], axis=1)              # (BP, H + C)
    merged = jnp.tanh(
        jnp.dot(concat, merge_w_t_ref[...], preferred_element_type=jnp.float32)
        + merge_b_ref[...]
    )                                                                 # (BP, H)

    # ---- generator: log_softmax over the lane-padded vocab ----
    logits = (
        jnp.dot(merged, gen_w_t_ref[...], preferred_element_type=jnp.float32)
        + gen_b_ref[...]
    )                                                                 # (BP, VP)
    m = jnp.max(logits, axis=-1, keepdims=True)
    lse = jnp.log(jnp.sum(jnp.exp(logits - m), axis=-1, keepdims=True)) + m
    logp = logits - lse                                               # (BP, VP)

    # ---- pack the per-step outputs into one lane-dense slab ----
    attn_pad = jnp.concatenate(
        [attn, jnp.zeros((bp, vocab_pad - seq), jnp.float32)], axis=1)  # (BP, VP)
    step_ref[0, :bp, :] = logp
    step_ref[0, bp:, :] = attn_pad


# ---------------------------------------------------------------------------
# Wrapper: runs T decode steps (== T calls of the PyTorch forward with the
# hidden state carried between calls) in a single pallas_call.
# ---------------------------------------------------------------------------
@jax.jit
def attn_seq_decoder_steps(prev_tokens, h0, c0, enc_outs, params):
    """prev_tokens: (T, B) int32.
    Returns (log_probs (T,B,V), (h,c) each (L,B,H), attn_weights (T,B,S))."""
    Tn = prev_tokens.shape[0]

    # --- pad batch to a full sublane tile (padded rows use PAD_IDX / zeros) ---
    tok_p = jnp.zeros((Tn, BP), jnp.int32).at[:, :B].set(prev_tokens.astype(jnp.int32))
    h0_p = jnp.zeros((L, BP, H), jnp.float32).at[:, :B, :].set(h0)
    c0_p = jnp.zeros((L, BP, H), jnp.float32).at[:, :B, :].set(c0)
    enc_p = jnp.zeros((BP, S, H), jnp.float32).at[:B].set(enc_outs)

    # --- pad vocab to a full lane tile; pad bias = -1e30 keeps log_softmax exact ---
    gen_w_p = jnp.zeros((H, VP), jnp.float32).at[:, :V].set(params["gen_w_t"])
    gen_b_p = jnp.full((1, VP), -1e30, jnp.float32).at[:, :V].set(params["gen_b"])

    b_comb = params["b_ih"] + params["b_hh"]                 # (L, 1, 4H)

    kernel = functools.partial(
        _attn_seq_decoder_kernel,
        n_layers=L, hid=H, bp=BP, seq=S, vocab_pad=VP)

    c2 = lambda t, tok: (0, 0)          # constant index_map -> weight stays resident
    c3 = lambda t, tok: (0, 0, 0)

    grid_spec = pltpu.PrefetchScalarGridSpec(
        num_scalar_prefetch=1,
        grid=(Tn,),
        in_specs=[
            pl.BlockSpec((V, E), c2),            # emb_table
            pl.BlockSpec((L, BP, H), c3),        # h0
            pl.BlockSpec((L, BP, H), c3),        # c0
            pl.BlockSpec((BP, S, H), c3),        # enc_outs
            pl.BlockSpec((L, E, 4 * H), c3),     # w_ih_t
            pl.BlockSpec((L, H, 4 * H), c3),     # w_hh_t
            pl.BlockSpec((L, 1, 4 * H), c3),     # b_ih + b_hh
            pl.BlockSpec((2 * H, H), c2),        # merge_w_t
            pl.BlockSpec((1, H), c2),            # merge_b
            pl.BlockSpec((H, VP), c2),           # gen_w_t (padded)
            pl.BlockSpec((1, VP), c2),           # gen_b   (padded)
        ],
        out_specs=(
            pl.BlockSpec((1, 2 * BP, VP), lambda t, tok: (t, 0, 0)),  # per-step slab
            pl.BlockSpec((L, BP, H), c3),        # final h (resident carry)
            pl.BlockSpec((L, BP, H), c3),        # final c (resident carry)
        ),
    )

    step_out, h_out, c_out = pl.pallas_call(
        kernel,
        grid_spec=grid_spec,
        out_shape=(
            jax.ShapeDtypeStruct((Tn, 2 * BP, VP), jnp.float32),
            jax.ShapeDtypeStruct((L, BP, H), jnp.float32),
            jax.ShapeDtypeStruct((L, BP, H), jnp.float32),
        ),
        compiler_params=pltpu.CompilerParams(
            dimension_semantics=("arbitrary",)),   # sequential recurrence over steps
    )(
        tok_p, params["emb_table"], h0_p, c0_p, enc_p,
        params["w_ih_t"], params["w_hh_t"], b_comb,
        params["merge_w_t"], params["merge_b"], gen_w_p, gen_b_p,
    )

    log_probs = step_out[:, :B, :V]                  # (T, B, V)
    attn_w = step_out[:, BP:BP + B, :S]              # (T, B, S)
    return log_probs, (h_out[:, :B, :], c_out[:, :B, :]), attn_w


# ---------------------------------------------------------------------------
# Pure-JAX reference (mirrors the PyTorch forward, called once per step)
# ---------------------------------------------------------------------------
def _reference_step(tok, h0, c0, enc_outs, params):
    x = params["emb_table"][tok]
    h_new, c_new = [], []
    for l in range(L):
        gates = (x @ params["w_ih_t"][l] + h0[l] @ params["w_hh_t"][l]
                 + params["b_ih"][l] + params["b_hh"][l])
        i_g = jax.nn.sigmoid(gates[:, :H])
        f_g = jax.nn.sigmoid(gates[:, H:2 * H])
        g_g = jnp.tanh(gates[:, 2 * H:3 * H])
        o_g = jax.nn.sigmoid(gates[:, 3 * H:])
        c_l = f_g * c0[l] + i_g * g_g
        h_l = o_g * jnp.tanh(c_l)
        h_new.append(h_l)
        c_new.append(c_l)
        x = h_l
    rnn_out = x
    scores = jnp.sum(enc_outs * rnn_out[:, None, :], axis=-1)
    attn = jax.nn.softmax(scores, axis=1)
    context = jnp.einsum("bs,bsc->bc", attn, enc_outs)
    concat = jnp.concatenate([rnn_out, context], axis=1)
    merged = jnp.tanh(concat @ params["merge_w_t"] + params["merge_b"])
    logits = merged @ params["gen_w_t"] + params["gen_b"]
    logp = jax.nn.log_softmax(logits, axis=-1)
    return logp, (jnp.stack(h_new), jnp.stack(c_new)), attn


def reference(prev_tokens, h0, c0, enc_outs, params):
    h, c = h0, c0
    lps, attns = [], []
    for t in range(prev_tokens.shape[0]):
        lp, (h, c), a = _reference_step(prev_tokens[t], h, c, enc_outs, params)
        lps.append(lp)
        attns.append(a)
    return jnp.stack(lps), (h, c), jnp.stack(attns)


# ---------------------------------------------------------------------------
def make_params(key):
    ks = jax.random.split(key, 10)
    std = 1.0 / np.sqrt(H)

    emb_table = 0.1 * jax.random.normal(ks[0], (V, E), jnp.float32)
    emb_table = emb_table.at[PAD_IDX].set(0.0)                       # padding_idx row = 0

    u = lambda k, shape: jax.random.uniform(k, shape, jnp.float32, -std, std)
    # LSTM weights, PyTorch gate order (i, f, g, o), stored pre-transposed for x @ W.
    w_ih_t = u(ks[1], (L, E, 4 * H))
    w_hh_t = u(ks[2], (L, H, 4 * H))
    b_ih = u(ks[3], (L, 1, 4 * H))
    b_hh = u(ks[4], (L, 1, 4 * H))
    # merge: Linear(H + ctx -> H)
    merge_w_t = u(ks[5], (H + H, H))
    merge_b = u(ks[6], (1, H))
    # generator: Linear(H -> V)
    gen_w_t = u(ks[7], (H, V))
    gen_b = u(ks[8], (1, V))

    return dict(
        emb_table=emb_table, w_ih_t=w_ih_t, w_hh_t=w_hh_t, b_ih=b_ih, b_hh=b_hh,
        merge_w_t=merge_w_t, merge_b=merge_b, gen_w_t=gen_w_t, gen_b=gen_b,
    )


if __name__ == "__main__":
    root = jax.random.PRNGKey(0)
    k_par, k_tok, k_enc, k_h, k_c = jax.random.split(root, 5)

    params = make_params(k_par)
    prev_tokens = jax.random.randint(k_tok, (T, B), 1, V, jnp.int32)  # tokens per step
    enc_outs = jax.random.normal(k_enc, (B, S, H), jnp.float32)       # encoder states
    h0 = jax.random.normal(k_h, (L, B, H), jnp.float32)
    c0 = jax.random.normal(k_c, (L, B, H), jnp.float32)

    log_probs, (h_out, c_out), attn_w = jax.block_until_ready(
        attn_seq_decoder_steps(prev_tokens, h0, c0, enc_outs, params)
    )

    # correctness check against a pure-JAX per-step reference of the PyTorch forward
    ref_lp, (ref_h, ref_c), ref_a = reference(prev_tokens, h0, c0, enc_outs, params)
    np.testing.assert_allclose(np.asarray(log_probs), np.asarray(ref_lp), atol=5e-4, rtol=5e-4)
    np.testing.assert_allclose(np.asarray(h_out), np.asarray(ref_h), atol=2e-4, rtol=2e-4)
    np.testing.assert_allclose(np.asarray(c_out), np.asarray(ref_c), atol=2e-4, rtol=2e-4)
    np.testing.assert_allclose(np.asarray(attn_w), np.asarray(ref_a), atol=2e-4, rtol=2e-4)

    print("KERNEL_OK")
</pallas_src>

<mosaic_0001>
module attributes {stable_mosaic.version = 11 : i64} {
  func.func @_attn_seq_decoder_kernel(%arg0: i32, %arg1: memref<4x8xi32, #tpu.memory_space<smem>>, %arg2: memref<64x32xf32, #tpu.memory_space<vmem>>, %arg3: memref<2x8x32xf32, #tpu.memory_space<vmem>>, %arg4: memref<2x8x32xf32, #tpu.memory_space<vmem>>, %arg5: memref<8x8x32xf32, #tpu.memory_space<vmem>>, %arg6: memref<2x32x128xf32, #tpu.memory_space<vmem>>, %arg7: memref<2x32x128xf32, #tpu.memory_space<vmem>>, %arg8: memref<2x1x128xf32, #tpu.memory_space<vmem>>, %arg9: memref<64x32xf32, #tpu.memory_space<vmem>>, %arg10: memref<1x32xf32, #tpu.memory_space<vmem>>, %arg11: memref<32x128xf32, #tpu.memory_space<vmem>>, %arg12: memref<1x128xf32, #tpu.memory_space<vmem>>, %arg13: memref<1x16x128xf32, #tpu.memory_space<vmem>>, %arg14: memref<2x8x32xf32, #tpu.memory_space<vmem>>, %arg15: memref<2x8x32xf32, #tpu.memory_space<vmem>>) attributes {dimension_semantics = [#tpu.dimension_semantics<arbitrary>], iteration_bounds = array<i64: 4>, scalar_prefetch = 1 : i64, scratch_operands = 0 : i64, tpu.core_type = #tpu.core_type<tc>, window_params = [{pipeline_mode = #tpu.pipeline_mode<synchronous>, transform_indices = @transform_0, window_bounds = array<i64: 64, 32>}, {pipeline_mode = #tpu.pipeline_mode<synchronous>, transform_indices = @transform_1, window_bounds = array<i64: 2, 8, 32>}, {pipeline_mode = #tpu.pipeline_mode<synchronous>, transform_indices = @transform_2, window_bounds = array<i64: 2, 8, 32>}, {pipeline_mode = #tpu.pipeline_mode<synchronous>, transform_indices = @transform_3, window_bounds = array<i64: 8, 8, 32>}, {pipeline_mode = #tpu.pipeline_mode<synchronous>, transform_indices = @transform_4, window_bounds = array<i64: 2, 32, 128>}, {pipeline_mode = #tpu.pipeline_mode<synchronous>, transform_indices = @transform_5, window_bounds = array<i64: 2, 32, 128>}, {pipeline_mode = #tpu.pipeline_mode<synchronous>, transform_indices = @transform_6, window_bounds = array<i64: 2, 1, 128>}, {pipeline_mode = #tpu.pipeline_mode<synchronous>, transform_indices = @transform_7, window_bounds = array<i64: 64, 32>}, {pipeline_mode = #tpu.pipeline_mode<synchronous>, transform_indices = @transform_8, window_bounds = array<i64: 1, 32>}, {pipeline_mode = #tpu.pipeline_mode<synchronous>, transform_indices = @transform_9, window_bounds = array<i64: 32, 128>}, {pipeline_mode = #tpu.pipeline_mode<synchronous>, transform_indices = @transform_10, window_bounds = array<i64: 1, 128>}, {transform_indices = @transform_11, window_bounds = array<i64: 1, 16, 128>}, {pipeline_mode = #tpu.pipeline_mode<synchronous>, transform_indices = @transform_12, window_bounds = array<i64: 2, 8, 32>}, {pipeline_mode = #tpu.pipeline_mode<synchronous>, transform_indices = @transform_13, window_bounds = array<i64: 2, 8, 32>}]} {
    %c0_i32 = arith.constant 0 : i32
    %0 = arith.cmpi eq, %arg0, %c0_i32 : i32
    %1 = arith.extui %0 : i1 to i32
    %c0_i32_0 = arith.constant 0 : i32
    %2 = arith.cmpi ne, %1, %c0_i32_0 : i32
    scf.if %2 {
      %c0_81 = arith.constant 0 : index
      %c0_82 = arith.constant 0 : index
      %c0_83 = arith.constant 0 : index
      %155 = vector.load %arg3[%c0_81, %c0_82, %c0_83] : memref<2x8x32xf32, #tpu.memory_space<vmem>>, vector<2x8x32xf32>
      %c0_84 = arith.constant 0 : index
      %c0_85 = arith.constant 0 : index
      %c0_86 = arith.constant 0 : index
      %156 = vector.load %arg14[%c0_84, %c0_85, %c0_86] : memref<2x8x32xf32, #tpu.memory_space<vmem>>, vector<2x8x32xf32>
      tpu.vector_store %arg14[%c0_84, %c0_85, %c0_86], %155 {strides = array<i32>} : memref<2x8x32xf32, #tpu.memory_space<vmem>>, vector<2x8x32xf32>,
      %c0_87 = arith.constant 0 : index
      %c0_88 = arith.constant 0 : index
      %c0_89 = arith.constant 0 : index
      %157 = vector.load %arg4[%c0_87, %c0_88, %c0_89] : memref<2x8x32xf32, #tpu.memory_space<vmem>>, vector<2x8x32xf32>
      %c0_90 = arith.constant 0 : index
      %c0_91 = arith.constant 0 : index
      %c0_92 = arith.constant 0 : index
      %158 = vector.load %arg15[%c0_90, %c0_91, %c0_92] : memref<2x8x32xf32, #tpu.memory_space<vmem>>, vector<2x8x32xf32>
      tpu.vector_store %arg15[%c0_90, %c0_91, %c0_92], %157 {strides = array<i32>} : memref<2x8x32xf32, #tpu.memory_space<vmem>>, vector<2x8x32xf32>,
    } else {
    }
    %3 = arith.index_cast %arg0 : i32 to index
    %c0 = arith.constant 0 : index
    %4 = memref.load %arg1[%3, %c0] : memref<4x8xi32, #tpu.memory_space<smem>>
    %5 = arith.index_cast %4 : i32 to index
    %c0_1 = arith.constant 0 : index
    %6 = vector.load %arg2[%5, %c0_1] : memref<64x32xf32, #tpu.memory_space<vmem>>, vector<1x32xf32>
    %7 = arith.index_cast %arg0 : i32 to index
    %c1 = arith.constant 1 : index
    %8 = memref.load %arg1[%7, %c1] : memref<4x8xi32, #tpu.memory_space<smem>>
    %9 = arith.index_cast %8 : i32 to index
    %c0_2 = arith.constant 0 : index
    %10 = vector.load %arg2[%9, %c0_2] : memref<64x32xf32, #tpu.memory_space<vmem>>, vector<1x32xf32>
    %11 = arith.index_cast %arg0 : i32 to index
    %c2 = arith.constant 2 : index
    %12 = memref.load %arg1[%11, %c2] : memref<4x8xi32, #tpu.memory_space<smem>>
    %13 = arith.index_cast %12 : i32 to index
    %c0_3 = arith.constant 0 : index
    %14 = vector.load %arg2[%13, %c0_3] : memref<64x32xf32, #tpu.memory_space<vmem>>, vector<1x32xf32>
    %15 = arith.index_cast %arg0 : i32 to index
    %c3 = arith.constant 3 : index
    %16 = memref.load %arg1[%15, %c3] : memref<4x8xi32, #tpu.memory_space<smem>>
    %17 = arith.index_cast %16 : i32 to index
    %c0_4 = arith.constant 0 : index
    %18 = vector.load %arg2[%17, %c0_4] : memref<64x32xf32, #tpu.memory_space<vmem>>, vector<1x32xf32>
    %19 = arith.index_cast %arg0 : i32 to index
    %c4 = arith.constant 4 : index
    %20 = memref.load %arg1[%19, %c4] : memref<4x8xi32, #tpu.memory_space<smem>>
    %21 = arith.index_cast %20 : i32 to index
    %c0_5 = arith.constant 0 : index
    %22 = vector.load %arg2[%21, %c0_5] : memref<64x32xf32, #tpu.memory_space<vmem>>, vector<1x32xf32>
    %23 = arith.index_cast %arg0 : i32 to index
    %c5 = arith.constant 5 : index
    %24 = memref.load %arg1[%23, %c5] : memref<4x8xi32, #tpu.memory_space<smem>>
    %25 = arith.index_cast %24 : i32 to index
    %c0_6 = arith.constant 0 : index
    %26 = vector.load %arg2[%25, %c0_6] : memref<64x32xf32, #tpu.memory_space<vmem>>, vector<1x32xf32>
    %27 = arith.index_cast %arg0 : i32 to index
    %c6 = arith.constant 6 : index
    %28 = memref.load %arg1[%27, %c6] : memref<4x8xi32, #tpu.memory_space<smem>>
    %29 = arith.index_cast %28 : i32 to index
    %c0_7 = arith.constant 0 : index
    %30 = vector.load %arg2[%29, %c0_7] : memref<64x32xf32, #tpu.memory_space<vmem>>, vector<1x32xf32>
    %31 = arith.index_cast %arg0 : i32 to index
    %c7 = arith.constant 7 : index
    %32 = memref.load %arg1[%31, %c7] : memref<4x8xi32, #tpu.memory_space<smem>>
    %33 = arith.index_cast %32 : i32 to index
    %c0_8 = arith.constant 0 : index
    %34 = vector.load %arg2[%33, %c0_8] : memref<64x32xf32, #tpu.memory_space<vmem>>, vector<1x32xf32>
    %35 = tpu.concatenate %6, %10, %14, %18, %22, %26, %30, %34 in 0 : vector<1x32xf32>, vector<1x32xf32>, vector<1x32xf32>, vector<1x32xf32>, vector<1x32xf32>, vector<1x32xf32>, vector<1x32xf32>, vector<1x32xf32> -> vector<8x32xf32>
    %c0_9 = arith.constant 0 : index
    %c0_10 = arith.constant 0 : index
    %c0_11 = arith.constant 0 : index
    %36 = vector.load %arg14[%c0_9, %c0_10, %c0_11] : memref<2x8x32xf32, #tpu.memory_space<vmem>>, vector<1x8x32xf32>
    %37 = vector.shape_cast %36 : vector<1x8x32xf32> to vector<8x32xf32>
    %c0_12 = arith.constant 0 : index
    %c0_13 = arith.constant 0 : index
    %c0_14 = arith.constant 0 : index
    %38 = vector.load %arg15[%c0_12, %c0_13, %c0_14] : memref<2x8x32xf32, #tpu.memory_space<vmem>>, vector<1x8x32xf32>
    %39 = vector.shape_cast %38 : vector<1x8x32xf32> to vector<8x32xf32>
    %c0_15 = arith.constant 0 : index
    %c0_16 = arith.constant 0 : index
    %c0_17 = arith.constant 0 : index
    %40 = vector.load %arg6[%c0_15, %c0_16, %c0_17] : memref<2x32x128xf32, #tpu.memory_space<vmem>>, vector<1x32x128xf32>
    %41 = vector.shape_cast %40 : vector<1x32x128xf32> to vector<32x128xf32>
    %cst = arith.constant dense<0.000000e+00> : vector<8x128xf32>
    %42 = tpu.matmul %35, %41, %cst {dimension_numbers = #tpu.dot_dimension_numbers<[1], [0], [0], [1], [0, 0, 1, 1], [], []>} : vector<8x32xf32>, vector<32x128xf32>, vector<8x128xf32> -> vector<8x128xf32>
    %c0_18 = arith.constant 0 : index
    %c0_19 = arith.constant 0 : index
    %c0_20 = arith.constant 0 : index
    %43 = vector.load %arg7[%c0_18, %c0_19, %c0_20] : memref<2x32x128xf32, #tpu.memory_space<vmem>>, vector<1x32x128xf32>
    %44 = vector.shape_cast %43 : vector<1x32x128xf32> to vector<32x128xf32>
    %cst_21 = arith.constant dense<0.000000e+00> : vector<8x128xf32>
    %45 = tpu.matmul %37, %44, %cst_21 {dimension_numbers = #tpu.dot_dimension_numbers<[1], [0], [0], [1], [0, 0, 1, 1], [], []>} : vector<8x32xf32>, vector<32x128xf32>, vector<8x128xf32> -> vector<8x128xf32>
    %46 = arith.addf %42, %45 : vector<8x128xf32>
    %c0_22 = arith.constant 0 : index
    %c0_23 = arith.constant 0 : index
    %c0_24 = arith.constant 0 : index
    %47 = vector.load %arg8[%c0_22, %c0_23, %c0_24] : memref<2x1x128xf32, #tpu.memory_space<vmem>>, vector<1x1x128xf32>
    %48 = vector.shape_cast %47 : vector<1x1x128xf32> to vector<1x128xf32>
    %49 = vector.broadcast %48 : vector<1x128xf32> to vector<8x128xf32>
    %50 = arith.addf %46, %49 : vector<8x128xf32>
    %51 = arith.negf %50 : vector<8x128xf32>
    %52 = math.exp %51 : vector<8x128xf32>
    %cst_25 = arith.constant 1.000000e+00 : f32
    %53 = vector.broadcast %cst_25 : f32 to vector<8x128xf32>
    %54 = arith.addf %53, %52 : vector<8x128xf32>
    %55 = arith.divf %53, %54 : vector<8x128xf32>
    %56 = math.tanh %50 : vector<8x128xf32>
    %57 = vector.extract_strided_slice %55 {offsets = [0, 0], sizes = [8, 32], strides = [1, 1]} : vector<8x128xf32> to vector<8x32xf32>
    %58 = vector.extract_strided_slice %55 {offsets = [0, 32], sizes = [8, 32], strides = [1, 1]} : vector<8x128xf32> to vector<8x32xf32>
    %59 = vector.extract_strided_slice %56 {offsets = [0, 64], sizes = [8, 32], strides = [1, 1]} : vector<8x128xf32> to vector<8x32xf32>
    %60 = vector.extract_strided_slice %55 {offsets = [0, 96], sizes = [8, 32], strides = [1, 1]} : vector<8x128xf32> to vector<8x32xf32>
    %61 = arith.mulf %58, %39 : vector<8x32xf32>
    %62 = arith.mulf %57, %59 : vector<8x32xf32>
    %63 = arith.addf %61, %62 : vector<8x32xf32>
    %64 = math.tanh %63 : vector<8x32xf32>
    %65 = arith.mulf %60, %64 : vector<8x32xf32>
    %c0_26 = arith.constant 0 : index
    %c0_27 = arith.constant 0 : index
    %c0_28 = arith.constant 0 : index
    %66 = vector.load %arg14[%c0_26, %c0_27, %c0_28] : memref<2x8x32xf32, #tpu.memory_space<vmem>>, vector<1x8x32xf32>
    %67 = vector.shape_cast %66 : vector<1x8x32xf32> to vector<8x32xf32>
    %68 = vector.shape_cast %65 : vector<8x32xf32> to vector<1x8x32xf32>
    tpu.vector_store %arg14[%c0_26, %c0_27, %c0_28], %68 {strides = array<i32>} : memref<2x8x32xf32, #tpu.memory_space<vmem>>, vector<1x8x32xf32>,
    %c0_29 = arith.constant 0 : index
    %c0_30 = arith.constant 0 : index
    %c0_31 = arith.constant 0 : index
    %69 = vector.load %arg15[%c0_29, %c0_30, %c0_31] : memref<2x8x32xf32, #tpu.memory_space<vmem>>, vector<1x8x32xf32>
    %70 = vector.shape_cast %69 : vector<1x8x32xf32> to vector<8x32xf32>
    %71 = vector.shape_cast %63 : vector<8x32xf32> to vector<1x8x32xf32>
    tpu.vector_store %arg15[%c0_29, %c0_30, %c0_31], %71 {strides = array<i32>} : memref<2x8x32xf32, #tpu.memory_space<vmem>>, vector<1x8x32xf32>,
    %c1_32 = arith.constant 1 : index
    %c0_33 = arith.constant 0 : index
    %c0_34 = arith.constant 0 : index
    %72 = vector.load %arg14[%c1_32, %c0_33, %c0_34] : memref<2x8x32xf32, #tpu.memory_space<vmem>>, vector<1x8x32xf32>
    %73 = vector.shape_cast %72 : vector<1x8x32xf32> to vector<8x32xf32>
    %c1_35 = arith.constant 1 : index
    %c0_36 = arith.constant 0 : index
    %c0_37 = arith.constant 0 : index
    %74 = vector.load %arg15[%c1_35, %c0_36, %c0_37] : memref<2x8x32xf32, #tpu.memory_space<vmem>>, vector<1x8x32xf32>
    %75 = vector.shape_cast %74 : vector<1x8x32xf32> to vector<8x32xf32>
    %c1_38 = arith.constant 1 : index
    %c0_39 = arith.constant 0 : index
    %c0_40 = arith.constant 0 : index
    %76 = vector.load %arg6[%c1_38, %c0_39, %c0_40] : memref<2x32x128xf32, #tpu.memory_space<vmem>>, vector<1x32x128xf32>
    %77 = vector.shape_cast %76 : vector<1x32x128xf32> to vector<32x128xf32>
    %cst_41 = arith.constant dense<0.000000e+00> : vector<8x128xf32>
    %78 = tpu.matmul %65, %77, %cst_41 {dimension_numbers = #tpu.dot_dimension_numbers<[1], [0], [0], [1], [0, 0, 1, 1], [], []>} : vector<8x32xf32>, vector<32x128xf32>, vector<8x128xf32> -> vector<8x128xf32>
    %c1_42 = arith.constant 1 : index
    %c0_43 = arith.constant 0 : index
    %c0_44 = arith.constant 0 : index
    %79 = vector.load %arg7[%c1_42, %c0_43, %c0_44] : memref<2x32x128xf32, #tpu.memory_space<vmem>>, vector<1x32x128xf32>
    %80 = vector.shape_cast %79 : vector<1x32x128xf32> to vector<32x128xf32>
    %cst_45 = arith.constant dense<0.000000e+00> : vector<8x128xf32>
    %81 = tpu.matmul %73, %80, %cst_45 {dimension_numbers = #tpu.dot_dimension_numbers<[1], [0], [0], [1], [0, 0, 1, 1], [], []>} : vector<8x32xf32>, vector<32x128xf32>, vector<8x128xf32> -> vector<8x128xf32>
    %82 = arith.addf %78, %81 : vector<8x128xf32>
    %c1_46 = arith.constant 1 : index
    %c0_47 = arith.constant 0 : index
    %c0_48 = arith.constant 0 : index
    %83 = vector.load %arg8[%c1_46, %c0_47, %c0_48] : memref<2x1x128xf32, #tpu.memory_space<vmem>>, vector<1x1x128xf32>
    %84 = vector.shape_cast %83 : vector<1x1x128xf32> to vector<1x128xf32>
    %85 = vector.broadcast %84 : vector<1x128xf32> to vector<8x128xf32>
    %86 = arith.addf %82, %85 : vector<8x128xf32>
    %87 = arith.negf %86 : vector<8x128xf32>
    %88 = math.exp %87 : vector<8x128xf32>
    %cst_49 = arith.constant 1.000000e+00 : f32
    %89 = vector.broadcast %cst_49 : f32 to vector<8x128xf32>
    %90 = arith.addf %89, %88 : vector<8x128xf32>
    %91 = arith.divf %89, %90 : vector<8x128xf32>
    %92 = math.tanh %86 : vector<8x128xf32>
    %93 = vector.extract_strided_slice %91 {offsets = [0, 0], sizes = [8, 32], strides = [1, 1]} : vector<8x128xf32> to vector<8x32xf32>
    %94 = vector.extract_strided_slice %91 {offsets = [0, 32], sizes = [8, 32], strides = [1, 1]} : vector<8x128xf32> to vector<8x32xf32>
    %95 = vector.extract_strided_slice %92 {offsets = [0, 64], sizes = [8, 32], strides = [1, 1]} : vector<8x128xf32> to vector<8x32xf32>
    %96 = vector.extract_strided_slice %91 {offsets = [0, 96], sizes = [8, 32], strides = [1, 1]} : vector<8x128xf32> to vector<8x32xf32>
    %97 = arith.mulf %94, %75 : vector<8x32xf32>
    %98 = arith.mulf %93, %95 : vector<8x32xf32>
    %99 = arith.addf %97, %98 : vector<8x32xf32>
    %100 = math.tanh %99 : vector<8x32xf32>
    %101 = arith.mulf %96, %100 : vector<8x32xf32>
    %c1_50 = arith.constant 1 : index
    %c0_51 = arith.constant 0 : index
    %c0_52 = arith.constant 0 : index
    %102 = vector.load %arg14[%c1_50, %c0_51, %c0_52] : memref<2x8x32xf32, #tpu.memory_space<vmem>>, vector<1x8x32xf32>
    %103 = vector.shape_cast %102 : vector<1x8x32xf32> to vector<8x32xf32>
    %104 = vector.shape_cast %101 : vector<8x32xf32> to vector<1x8x32xf32>
    tpu.vector_store %arg14[%c1_50, %c0_51, %c0_52], %104 {strides = array<i32>} : memref<2x8x32xf32, #tpu.memory_space<vmem>>, vector<1x8x32xf32>,
    %c1_53 = arith.constant 1 : index
    %c0_54 = arith.constant 0 : index
    %c0_55 = arith.constant 0 : index
    %105 = vector.load %arg15[%c1_53, %c0_54, %c0_55] : memref<2x8x32xf32, #tpu.memory_space<vmem>>, vector<1x8x32xf32>
    %106 = vector.shape_cast %105 : vector<1x8x32xf32> to vector<8x32xf32>
    %107 = vector.shape_cast %99 : vector<8x32xf32> to vector<1x8x32xf32>
    tpu.vector_store %arg15[%c1_53, %c0_54, %c0_55], %107 {strides = array<i32>} : memref<2x8x32xf32, #tpu.memory_space<vmem>>, vector<1x8x32xf32>,
    %c0_56 = arith.constant 0 : index
    %c0_57 = arith.constant 0 : index
    %c0_58 = arith.constant 0 : index
    %108 = vector.load %arg5[%c0_56, %c0_57, %c0_58] : memref<8x8x32xf32, #tpu.memory_space<vmem>>, vector<8x8x32xf32>
    %109 = vector.shape_cast %101 : vector<8x32xf32> to vector<8x1x32xf32>
    "tpu.trace_start"() <{level = 10 : i32, message = "bqd,bkd->bqk"}> : () -> ()
    %cst_59 = arith.constant dense<0.000000e+00> : vector<8x1x8xf32>
    %110 = tpu.matmul %109, %108, %cst_59 {dimension_numbers = #tpu.dot_dimension_numbers<[2], [2], [1], [1], [0, 0, 0, 1, 1, 1], [0], [0]>} : vector<8x1x32xf32>, vector<8x8x32xf32>, vector<8x1x8xf32> -> vector<8x1x8xf32>
    "tpu.trace_stop"() : () -> ()
    %111 = vector.shape_cast %110 : vector<8x1x8xf32> to vector<8x8xf32>
    %cst_60 = arith.constant dense<0xFF800000> : vector<8xf32>
    %112 = vector.multi_reduction <maximumf>, %111, %cst_60 [1] : vector<8x8xf32> to vector<8xf32>
    %113 = vector.shape_cast %112 : vector<8xf32> to vector<8x1xf32>
    %114 = vector.broadcast %113 : vector<8x1xf32> to vector<8x8xf32>
    %115 = arith.subf %111, %114 : vector<8x8xf32>
    %116 = math.exp %115 : vector<8x8xf32>
    %cst_61 = arith.constant dense<0.000000e+00> : vector<8xf32>
    %117 = vector.multi_reduction <add>, %116, %cst_61 [1] : vector<8x8xf32> to vector<8xf32>
    %118 = vector.shape_cast %117 : vector<8xf32> to vector<8x1xf32>
    %119 = vector.broadcast %118 : vector<8x1xf32> to vector<8x8xf32>
    %120 = arith.divf %116, %119 : vector<8x8xf32>
    %121 = vector.shape_cast %120 : vector<8x8xf32> to vector<8x1x8xf32>
    "tpu.trace_start"() <{level = 10 : i32, message = "bqk,bkd->bqd"}> : () -> ()
    %cst_62 = arith.constant dense<0.000000e+00> : vector<8x1x32xf32>
    %122 = tpu.matmul %121, %108, %cst_62 {dimension_numbers = #tpu.dot_dimension_numbers<[2], [1], [1], [2], [0, 0, 0, 1, 1, 2], [0], [0]>} : vector<8x1x8xf32>, vector<8x8x32xf32>, vector<8x1x32xf32> -> vector<8x1x32xf32>
    "tpu.trace_stop"() : () -> ()
    %123 = vector.shape_cast %122 : vector<8x1x32xf32> to vector<8x32xf32>
    %124 = tpu.concatenate %101, %123 in 1 : vector<8x32xf32>, vector<8x32xf32> -> vector<8x64xf32>
    %c0_63 = arith.constant 0 : index
    %c0_64 = arith.constant 0 : index
    %125 = vector.load %arg9[%c0_63, %c0_64] : memref<64x32xf32, #tpu.memory_space<vmem>>, vector<64x32xf32>
    %cst_65 = arith.constant dense<0.000000e+00> : vector<8x32xf32>
    %126 = tpu.matmul %124, %125, %cst_65 {dimension_numbers = #tpu.dot_dimension_numbers<[1], [0], [0], [1], [0, 0, 1, 1], [], []>} : vector<8x64xf32>, vector<64x32xf32>, vector<8x32xf32> -> vector<8x32xf32>
    %c0_66 = arith.constant 0 : index
    %c0_67 = arith.constant 0 : index
    %127 = vector.load %arg10[%c0_66, %c0_67] : memref<1x32xf32, #tpu.memory_space<vmem>>, vector<1x32xf32>
    %128 = vector.broadcast %127 : vector<1x32xf32> to vector<8x32xf32>
    %129 = arith.addf %126, %128 : vector<8x32xf32>
    %130 = math.tanh %129 : vector<8x32xf32>
    %c0_68 = arith.constant 0 : index
    %c0_69 = arith.constant 0 : index
    %131 = vector.load %arg11[%c0_68, %c0_69] : memref<32x128xf32, #tpu.memory_space<vmem>>, vector<32x128xf32>
    %cst_70 = arith.constant dense<0.000000e+00> : vector<8x128xf32>
    %132 = tpu.matmul %130, %131, %cst_70 {dimension_numbers = #tpu.dot_dimension_numbers<[1], [0], [0], [1], [0, 0, 1, 1], [], []>} : vector<8x32xf32>, vector<32x128xf32>, vector<8x128xf32> -> vector<8x128xf32>
    %c0_71 = arith.constant 0 : index
    %c0_72 = arith.constant 0 : index
    %133 = vector.load %arg12[%c0_71, %c0_72] : memref<1x128xf32, #tpu.memory_space<vmem>>, vector<1x128xf32>
    %134 = vector.broadcast %133 : vector<1x128xf32> to vector<8x128xf32>
    %135 = arith.addf %132, %134 : vector<8x128xf32>
    %cst_73 = arith.constant dense<0xFF800000> : vector<8xf32>
    %136 = vector.multi_reduction <maximumf>, %135, %cst_73 [1] : vector<8x128xf32> to vector<8xf32>
    %137 = vector.shape_cast %136 : vector<8xf32> to vector<8x1xf32>
    %138 = vector.broadcast %137 : vector<8x1xf32> to vector<8x128xf32>
    %139 = arith.subf %135, %138 : vector<8x128xf32>
    %140 = math.exp %139 : vector<8x128xf32>
    %cst_74 = arith.constant dense<0.000000e+00> : vector<8xf32>
    %141 = vector.multi_reduction <add>, %140, %cst_74 [1] : vector<8x128xf32> to vector<8xf32>
    %142 = vector.shape_cast %141 : vector<8xf32> to vector<8x1xf32>
    %143 = math.log %142 : vector<8x1xf32>
    %144 = arith.addf %143, %137 : vector<8x1xf32>
    %145 = vector.broadcast %144 : vector<8x1xf32> to vector<8x128xf32>
    %146 = arith.subf %135, %145 : vector<8x128xf32>
    %cst_75 = arith.constant 0.000000e+00 : f32
    %147 = vector.broadcast %cst_75 : f32 to vector<8x120xf32>
    %148 = tpu.concatenate %120, %147 in 1 : vector<8x8xf32>, vector<8x120xf32> -> vector<8x128xf32>
    %c0_76 = arith.constant 0 : index
    %c0_77 = arith.constant 0 : index
    %c0_78 = arith.constant 0 : index
    %149 = vector.load %arg13[%c0_76, %c0_77, %c0_78] : memref<1x16x128xf32, #tpu.memory_space<vmem>>, vector<1x8x128xf32>
    %150 = vector.shape_cast %149 : vector<1x8x128xf32> to vector<8x128xf32>
    %151 = vector.shape_cast %146 : vector<8x128xf32> to vector<1x8x128xf32>
    tpu.vector_store %arg13[%c0_76, %c0_77, %c0_78], %151 {strides = array<i32>} : memref<1x16x128xf32, #tpu.memory_space<vmem>>, vector<1x8x128xf32>,
    %c0_79 = arith.constant 0 : index
    %c8 = arith.constant 8 : index
    %c0_80 = arith.constant 0 : index
    %152 = vector.load %arg13[%c0_79, %c8, %c0_80] : memref<1x16x128xf32, #tpu.memory_space<vmem>>, vector<1x8x128xf32>
    %153 = vector.shape_cast %152 : vector<1x8x128xf32> to vector<8x128xf32>
    %154 = vector.shape_cast %148 : vector<8x128xf32> to vector<1x8x128xf32>
    tpu.vector_store %arg13[%c0_79, %c8, %c0_80], %154 {strides = array<i32>} : memref<1x16x128xf32, #tpu.memory_space<vmem>>, vector<1x8x128xf32>,
    return
  }
  func.func @transform_0(%arg0: i32, %arg1: memref<4x8xi32, #tpu.memory_space<smem>>) -> (i32, i32) {
    %c0_i32 = arith.constant 0 : i32
    %c0_i32_0 = arith.constant 0 : i32
    %c0_i32_1 = arith.constant 0 : i32
    return %c0_i32, %c0_i32_0 : i32, i32
  }
  func.func @transform_1(%arg0: i32, %arg1: memref<4x8xi32, #tpu.memory_space<smem>>) -> (i32, i32, i32) {
    %c0_i32 = arith.constant 0 : i32
    %c0_i32_0 = arith.constant 0 : i32
    %c0_i32_1 = arith.constant 0 : i32
    %c0_i32_2 = arith.constant 0 : i32
    return %c0_i32, %c0_i32_0, %c0_i32_1 : i32, i32, i32
  }
  func.func @transform_2(%arg0: i32, %arg1: memref<4x8xi32, #tpu.memory_space<smem>>) -> (i32, i32, i32) {
    %c0_i32 = arith.constant 0 : i32
    %c0_i32_0 = arith.constant 0 : i32
    %c0_i32_1 = arith.constant 0 : i32
    %c0_i32_2 = arith.constant 0 : i32
    return %c0_i32, %c0_i32_0, %c0_i32_1 : i32, i32, i32
  }
  func.func @transform_3(%arg0: i32, %arg1: memref<4x8xi32, #tpu.memory_space<smem>>) -> (i32, i32, i32) {
    %c0_i32 = arith.constant 0 : i32
    %c0_i32_0 = arith.constant 0 : i32
    %c0_i32_1 = arith.constant 0 : i32
    %c0_i32_2 = arith.constant 0 : i32
    return %c0_i32, %c0_i32_0, %c0_i32_1 : i32, i32, i32
  }
  func.func @transform_4(%arg0: i32, %arg1: memref<4x8xi32, #tpu.memory_space<smem>>) -> (i32, i32, i32) {
    %c0_i32 = arith.constant 0 : i32
    %c0_i32_0 = arith.constant 0 : i32
    %c0_i32_1 = arith.constant 0 : i32
    %c0_i32_2 = arith.constant 0 : i32
    return %c0_i32, %c0_i32_0, %c0_i32_1 : i32, i32, i32
  }
  func.func @transform_5(%arg0: i32, %arg1: memref<4x8xi32, #tpu.memory_space<smem>>) -> (i32, i32, i32) {
    %c0_i32 = arith.constant 0 : i32
    %c0_i32_0 = arith.constant 0 : i32
    %c0_i32_1 = arith.constant 0 : i32
    %c0_i32_2 = arith.constant 0 : i32
    return %c0_i32, %c0_i32_0, %c0_i32_1 : i32, i32, i32
  }
  func.func @transform_6(%arg0: i32, %arg1: memref<4x8xi32, #tpu.memory_space<smem>>) -> (i32, i32, i32) {
    %c0_i32 = arith.constant 0 : i32
    %c0_i32_0 = arith.constant 0 : i32
    %c0_i32_1 = arith.constant 0 : i32
    %c0_i32_2 = arith.constant 0 : i32
    return %c0_i32, %c0_i32_0, %c0_i32_1 : i32, i32, i32
  }
  func.func @transform_7(%arg0: i32, %arg1: memref<4x8xi32, #tpu.memory_space<smem>>) -> (i32, i32) {
    %c0_i32 = arith.constant 0 : i32
    %c0_i32_0 = arith.constant 0 : i32
    %c0_i32_1 = arith.constant 0 : i32
    return %c0_i32, %c0_i32_0 : i32, i32
  }
  func.func @transform_8(%arg0: i32, %arg1: memref<4x8xi32, #tpu.memory_space<smem>>) -> (i32, i32) {
    %c0_i32 = arith.constant 0 : i32
    %c0_i32_0 = arith.constant 0 : i32
    %c0_i32_1 = arith.constant 0 : i32
    return %c0_i32, %c0_i32_0 : i32, i32
  }
  func.func @transform_9(%arg0: i32, %arg1: memref<4x8xi32, #tpu.memory_space<smem>>) -> (i32, i32) {
    %c0_i32 = arith.constant 0 : i32
    %c0_i32_0 = arith.constant 0 : i32
    %c0_i32_1 = arith.constant 0 : i32
    return %c0_i32, %c0_i32_0 : i32, i32
  }
  func.func @transform_10(%arg0: i32, %arg1: memref<4x8xi32, #tpu.memory_space<smem>>) -> (i32, i32) {
    %c0_i32 = arith.constant 0 : i32
    %c0_i32_0 = arith.constant 0 : i32
    %c0_i32_1 = arith.constant 0 : i32
    return %c0_i32, %c0_i32_0 : i32, i32
  }
  func.func @transform_11(%arg0: i32, %arg1: memref<4x8xi32, #tpu.memory_space<smem>>) -> (i32, i32, i32) {
    %c0_i32 = arith.constant 0 : i32
    %c0_i32_0 = arith.constant 0 : i32
    %c0_i32_1 = arith.constant 0 : i32
    return %arg0, %c0_i32, %c0_i32_0 : i32, i32, i32
  }
  func.func @transform_12(%arg0: i32, %arg1: memref<4x8xi32, #tpu.memory_space<smem>>) -> (i32, i32, i32) {
    %c0_i32 = arith.constant 0 : i32
    %c0_i32_0 = arith.constant 0 : i32
    %c0_i32_1 = arith.constant 0 : i32
    %c0_i32_2 = arith.constant 0 : i32
    return %c0_i32, %c0_i32_0, %c0_i32_1 : i32, i32, i32
  }
  func.func @transform_13(%arg0: i32, %arg1: memref<4x8xi32, #tpu.memory_space<smem>>) -> (i32, i32, i32) {
    %c0_i32 = arith.constant 0 : i32
    %c0_i32_0 = arith.constant 0 : i32
    %c0_i32_1 = arith.constant 0 : i32
    %c0_i32_2 = arith.constant 0 : i32
    return %c0_i32, %c0_i32_0, %c0_i32_1 : i32, i32, i32
  }
}

</mosaic_0001>

<llo_original>
// kernel: attn_seq_decoder_steps.1
$region0: #{attn_seq_decoder_steps.1}
  #allocation0 [shape = 'u32[]', space=smem, size = 0x4, offset = 0x4, fixed_abs, tag = 'smem constant byte address 0x4 - core index']
  #allocation1 [shape = 'u32[144,128]{1,0:T(1,128)}', space=vmem, size = 0x12000, scoped, tag = 'internal scratch']
  #allocation2 [shape = 's32[1]{0}', space=sflag, size = 0x4, scoped, tag = 'scoped memory for attn_seq_decoder_steps.1']
  #allocation3 [shape = 'u8[2048]{0}', space=smem, size = 0x800, scoped, tag = 'prefetched SMEM operand 0']
  %s0 = inlined_call_operand.vmem [shape: s32[4,8], index: 0, kind: input, shape index: {}]
  %s1 = inlined_call_operand.vmem [shape: f32[64,32], index: 1, kind: input, shape index: {}]
  %s2 = inlined_call_operand.vmem [shape: f32[2,8,32], index: 2, kind: input, shape index: {}]
  %s3 = inlined_call_operand.vmem [shape: f32[2,8,32], index: 3, kind: input, shape index: {}]
  %s4 = inlined_call_operand.vmem [shape: f32[8,8,32], index: 4, kind: input, shape index: {}]
  %s5 = inlined_call_operand.vmem [shape: f32[2,32,128], index: 5, kind: input, shape index: {}]
  %s6 = inlined_call_operand.vmem [shape: f32[2,32,128], index: 6, kind: input, shape index: {}]
  %s7 = inlined_call_operand.vmem [shape: f32[2,1,128], index: 7, kind: input, shape index: {}]
  %s8 = inlined_call_operand.vmem [shape: f32[64,32], index: 8, kind: input, shape index: {}]
  %s9 = inlined_call_operand.vmem [shape: f32[1,32], index: 9, kind: input, shape index: {}]
  %s10 = inlined_call_operand.vmem [shape: f32[32,128], index: 10, kind: input, shape index: {}]
  %s11 = inlined_call_operand.vmem [shape: f32[1,128], index: 11, kind: input, shape index: {}]
  %s12 = inlined_call_operand.vmem [shape: f32[4,16,128], index: 12, kind: output, shape index: {0}]
  %s13 = inlined_call_operand.vmem [shape: f32[2,8,32], index: 13, kind: output, shape index: {1}]
  %s14 = inlined_call_operand.vmem [shape: f32[2,8,32], index: 14, kind: output, shape index: {2}]
  %15 = xla_tuple %s12, %s13, %s14
  %s16 = sld [smem:[#allocation0]]
  $region97: #{attn_seq_decoder_steps.1} parent=0
    _
  %s18 = ssub.s32 1, %s16
  %s19 = scalar_select 0, %s18, %s16
  %s20 = sshll.u32 %s0, 4
  %s21 = int_to_ptr.vmem [resolvable:$true] %s20
  %23 = dma.vmem_to_smem %s21, 64, [#allocation3], [#allocation2]
  %24 = dma.done [#allocation2], 64
  %25 = sfence
  loop: start=0, step=1, limit=6
  $region2: #{attn_seq_decoder_steps.1} parent=0 // loop_pre_header
    _
  $region3: #{attn_seq_decoder_steps.1} parent=0 // loop_header
    %s27 = sphi 0, %s31
    %p28 = scmp.ge.s32.totalorder %s27, 6
    %s35 = sphi 0, %s35
    %s37 = sphi 0, %s35
    %s38 = sphi 0, %s37
    %s52 = sphi 0, %s38
    %s56 = sphi 0, %s56
    %s58 = sphi 0, %s56
    %s59 = sphi 0, %s58
    %s73 = sphi 0, %s59
    %s77 = sphi 0, %s77
    %s79 = sphi 0, %s77
    %s80 = sphi 0, %s79
    %s94 = sphi 0, %s80
    %s98 = sphi 0, %s98
    %s100 = sphi 0, %s98
    %s101 = sphi 0, %s100
    %s115 = sphi 0, %s101
    %s119 = sphi 0, %s119
    %s121 = sphi 0, %s119
    %s122 = sphi 0, %s121
    %s136 = sphi 0, %s122
    %s140 = sphi 0, %s140
    %s142 = sphi 0, %s140
    %s143 = sphi 0, %s142
    %s157 = sphi 0, %s143
    %s161 = sphi 0, %s161
    %s163 = sphi 0, %s161
    %s164 = sphi 0, %s163
    %s178 = sphi 0, %s164
    %s182 = sphi 0, %s182
    %s184 = sphi 0, %s182
    %s185 = sphi 0, %s184
    %s199 = sphi 0, %s185
    %s203 = sphi 0, %s203
    %s205 = sphi 0, %s203
    %s206 = sphi 0, %s205
    %s220 = sphi 0, %s206
    %s224 = sphi 0, %s224
    %s226 = sphi 0, %s224
    %s227 = sphi 0, %s226
    %s241 = sphi 0, %s227
    %s245 = sphi 0, %s245
    %s247 = sphi 0, %s245
    %s248 = sphi 0, %s247
    %s262 = sphi 0, %s248
    %s268 = sphi 0, %s270
    %s271 = sphi 0, %s268
    %s272 = sphi 0, %s271
    %s288 = sphi 0, %s272
    %s292 = sphi 0, %s292
    %s294 = sphi 0, %s292
    %s295 = sphi 0, %s294
    %s309 = sphi 0, %s295
    %s313 = sphi 0, %s313
    %s315 = sphi 0, %s313
    %s316 = sphi 0, %s315
    %s330 = sphi 0, %s316
  $region4: #{attn_seq_decoder_steps.1} parent=0 // loop_header_branch
    %30 = sbr.rel (%p28) target = $region8
  $region5: #{attn_seq_decoder_steps.1} parent=0 // loop_body
    %s32 = ssub.s32 %s27, 1
    %s33 = ssub.s32 %s27, 2
    %s34 = sadd.s32 %s27, 1
    %s36 = sadd.s32 %s35, 1
    %p39 = scmp.eq.s32.totalorder %s27, 3
    %p40 = scmp.ne.s32.totalorder %s35, %s37
    %p41 = scmp.eq.s32.totalorder %s27, 0
    %p42 = por %p40, %p41
    %p43 = scmp.ne.s32.totalorder %s35, %s37
    %p44 = scmp.eq.s32.totalorder %s32, 3
    %p45 = por %p43, %p44
    %p46 = scmp.ne.s32.totalorder %s37, %s38
    %p47 = scmp.eq.s32.totalorder %s32, 0
    %p48 = por %p46, %p47
    %p49 = scmp.ne.s32.totalorder %s37, %s38
    %p50 = scmp.eq.s32.totalorder %s33, 3
    %p51 = por %p49, %p50
    %p53 = scmp.ne.s32.totalorder %s38, %s52
    %p54 = scmp.eq.s32.totalorder %s33, 0
    %p55 = por %p53, %p54
    %s57 = sadd.s32 %s56, 1
    %p60 = scmp.eq.s32.totalorder %s27, 3
    %p61 = scmp.ne.s32.totalorder %s56, %s58
    %p62 = scmp.eq.s32.totalorder %s27, 0
    %p63 = por %p61, %p62
    %p64 = scmp.ne.s32.totalorder %s56, %s58
    %p65 = scmp.eq.s32.totalorder %s32, 3
    %p66 = por %p64, %p65
    %p67 = scmp.ne.s32.totalorder %s58, %s59
    %p68 = scmp.eq.s32.totalorder %s32, 0
    %p69 = por %p67, %p68
    %p70 = scmp.ne.s32.totalorder %s58, %s59
    %p71 = scmp.eq.s32.totalorder %s33, 3
    %p72 = por %p70, %p71
    %p74 = scmp.ne.s32.totalorder %s59, %s73
    %p75 = scmp.eq.s32.totalorder %s33, 0
    %p76 = por %p74, %p75
    %s78 = sadd.s32 %s77, 1
    %p81 = scmp.eq.s32.totalorder %s27, 3
    %p82 = scmp.ne.s32.totalorder %s77, %s79
    %p83 = scmp.eq.s32.totalorder %s27, 0
    %p84 = por %p82, %p83
    %p85 = scmp.ne.s32.totalorder %s77, %s79
    %p86 = scmp.eq.s32.totalorder %s32, 3
    %p87 = por %p85, %p86
    %p88 = scmp.ne.s32.totalorder %s79, %s80
    %p89 = scmp.eq.s32.totalorder %s32, 0
    %p90 = por %p88, %p89
    %p91 = scmp.ne.s32.totalorder %s79, %s80
    %p92 = scmp.eq.s32.totalorder %s33, 3
    %p93 = por %p91, %p92
    %p95 = scmp.ne.s32.totalorder %s80, %s94
    %p96 = scmp.eq.s32.totalorder %s33, 0
    %p97 = por %p95, %p96
    %s99 = sadd.s32 %s98, 1
    %p102 = scmp.eq.s32.totalorder %s27, 3
    %p103 = scmp.ne.s32.totalorder %s98, %s100
    %p104 = scmp.eq.s32.totalorder %s27, 0
    %p105 = por %p103, %p104
    %p106 = scmp.ne.s32.totalorder %s98, %s100
    %p107 = scmp.eq.s32.totalorder %s32, 3
    %p108 = por %p106, %p107
    %p109 = scmp.ne.s32.totalorder %s100, %s101
    %p110 = scmp.eq.s32.totalorder %s32, 0
    %p111 = por %p109, %p110
    %p112 = scmp.ne.s32.totalorder %s100, %s101
    %p113 = scmp.eq.s32.totalorder %s33, 3
    %p114 = por %p112, %p113
    %p116 = scmp.ne.s32.totalorder %s101, %s115
    %p117 = scmp.eq.s32.totalorder %s33, 0
    %p118 = por %p116, %p117
    %s120 = sadd.s32 %s119, 1
    %p123 = scmp.eq.s32.totalorder %s27, 3
    %p124 = scmp.ne.s32.totalorder %s119, %s121
    %p125 = scmp.eq.s32.totalorder %s27, 0
    %p126 = por %p124, %p125
    %p127 = scmp.ne.s32.totalorder %s119, %s121
    %p128 = scmp.eq.s32.totalorder %s32, 3
    %p129 = por %p127, %p128
    %p130 = scmp.ne.s32.totalorder %s121, %s122
    %p131 = scmp.eq.s32.totalorder %s32, 0
    %p132 = por %p130, %p131
    %p133 = scmp.ne.s32.totalorder %s121, %s122
    %p134 = scmp.eq.s32.totalorder %s33, 3
    %p135 = por %p133, %p134
    %p137 = scmp.ne.s32.totalorder %s122, %s136
    %p138 = scmp.eq.s32.totalorder %s33, 0
    %p139 = por %p137, %p138
    %s141 = sadd.s32 %s140, 1
    %p144 = scmp.eq.s32.totalorder %s27, 3
    %p145 = scmp.ne.s32.totalorder %s140, %s142
    %p146 = scmp.eq.s32.totalorder %s27, 0
    %p147 = por %p145, %p146
    %p148 = scmp.ne.s32.totalorder %s140, %s142
    %p149 = scmp.eq.s32.totalorder %s32, 3
    %p150 = por %p148, %p149
    %p151 = scmp.ne.s32.totalorder %s142, %s143
    %p152 = scmp.eq.s32.totalorder %s32, 0
    %p153 = por %p151, %p152
    %p154 = scmp.ne.s32.totalorder %s142, %s143
    %p155 = scmp.eq.s32.totalorder %s33, 3
    %p156 = por %p154, %p155
    %p158 = scmp.ne.s32.totalorder %s143, %s157
    %p159 = scmp.eq.s32.totalorder %s33, 0
    %p160 = por %p158, %p159
    %s162 = sadd.s32 %s161, 1
    %p165 = scmp.eq.s32.totalorder %s27, 3
    %p166 = scmp.ne.s32.totalorder %s161, %s163
    %p167 = scmp.eq.s32.totalorder %s27, 0
    %p168 = por %p166, %p167
    %p169 = scmp.ne.s32.totalorder %s161, %s163
    %p170 = scmp.eq.s32.totalorder %s32, 3
    %p171 = por %p169, %p170
    %p172 = scmp.ne.s32.totalorder %s163, %s164
    %p173 = scmp.eq.s32.totalorder %s32, 0
    %p174 = por %p172, %p173
    %p175 = scmp.ne.s32.totalorder %s163, %s164
    %p176 = scmp.eq.s32.totalorder %s33, 3
    %p177 = por %p175, %p176
    %p179 = scmp.ne.s32.totalorder %s164, %s178
    %p180 = scmp.eq.s32.totalorder %s33, 0
    %p181 = por %p179, %p180
    %s183 = sadd.s32 %s182, 1
    %p186 = scmp.eq.s32.totalorder %s27, 3
    %p187 = scmp.ne.s32.totalorder %s182, %s184
    %p188 = scmp.eq.s32.totalorder %s27, 0
    %p189 = por %p187, %p188
    %p190 = scmp.ne.s32.totalorder %s182, %s184
    %p191 = scmp.eq.s32.totalorder %s32, 3
    %p192 = por %p190, %p191
    %p193 = scmp.ne.s32.totalorder %s184, %s185
    %p194 = scmp.eq.s32.totalorder %s32, 0
    %p195 = por %p193, %p194
    %p196 = scmp.ne.s32.totalorder %s184, %s185
    %p197 = scmp.eq.s32.totalorder %s33, 3
    %p198 = por %p196, %p197
    %p200 = scmp.ne.s32.totalorder %s185, %s199
    %p201 = scmp.eq.s32.totalorder %s33, 0
    %p202 = por %p200, %p201
    %s204 = sadd.s32 %s203, 1
    %p207 = scmp.eq.s32.totalorder %s27, 3
    %p208 = scmp.ne.s32.totalorder %s203, %s205
    %p209 = scmp.eq.s32.totalorder %s27, 0
    %p210 = por %p208, %p209
    %p211 = scmp.ne.s32.totalorder %s203, %s205
    %p212 = scmp.eq.s32.totalorder %s32, 3
    %p213 = por %p211, %p212
    %p214 = scmp.ne.s32.totalorder %s205, %s206
    %p215 = scmp.eq.s32.totalorder %s32, 0
    %p216 = por %p214, %p215
    %p217 = scmp.ne.s32.totalorder %s205, %s206
    %p218 = scmp.eq.s32.totalorder %s33, 3
    %p219 = por %p217, %p218
    %p221 = scmp.ne.s32.totalorder %s206, %s220
    %p222 = scmp.eq.s32.totalorder %s33, 0
    %p223 = por %p221, %p222
    %s225 = sadd.s32 %s224, 1
    %p228 = scmp.eq.s32.totalorder %s27, 3
    %p229 = scmp.ne.s32.totalorder %s224, %s226
    %p230 = scmp.eq.s32.totalorder %s27, 0
    %p231 = por %p229, %p230
    %p232 = scmp.ne.s32.totalorder %s224, %s226
    %p233 = scmp.eq.s32.totalorder %s32, 3
    %p234 = por %p232, %p233
    %p235 = scmp.ne.s32.totalorder %s226, %s227
    %p236 = scmp.eq.s32.totalorder %s32, 0
    %p237 = por %p235, %p236
    %p238 = scmp.ne.s32.totalorder %s226, %s227
    %p239 = scmp.eq.s32.totalorder %s33, 3
    %p240 = por %p238, %p239
    %p242 = scmp.ne.s32.totalorder %s227, %s241
    %p243 = scmp.eq.s32.totalorder %s33, 0
    %p244 = por %p242, %p243
    %s246 = sadd.s32 %s245, 1
    %p249 = scmp.eq.s32.totalorder %s27, 3
    %p250 = scmp.ne.s32.totalorder %s245, %s247
    %p251 = scmp.eq.s32.totalorder %s27, 0
    %p252 = por %p250, %p251
    %p253 = scmp.ne.s32.totalorder %s245, %s247
    %p254 = scmp.eq.s32.totalorder %s32, 3
    %p255 = por %p253, %p254
    %p256 = scmp.ne.s32.totalorder %s247, %s248
    %p257 = scmp.eq.s32.totalorder %s32, 0
    %p258 = por %p256, %p257
    %p259 = scmp.ne.s32.totalorder %s247, %s248
    %p260 = scmp.eq.s32.totalorder %s33, 3
    %p261 = por %p259, %p260
    %p263 = scmp.ne.s32.totalorder %s248, %s262
    %p264 = scmp.eq.s32.totalorder %s33, 0
    %p265 = por %p263, %p264
    %s266 = ssub.s32 %s27, %s34
    %p267 = scmp.eq.s32.totalorder %s266, 0
    %s269 = sadd.s32 %s268, 1
    %s270 = scalar_select %p267, %s268, %s269
    %p273 = pneg %p267
    %p274 = scmp.eq.s32.totalorder %s27, 3
    %p275 = por %p273, %p274
    %p276 = scmp.ne.s32.totalorder %s268, %s271
    %p277 = scmp.eq.s32.totalorder %s27, 0
    %p278 = por %p276, %p277
    %p279 = scmp.ne.s32.totalorder %s268, %s271
    %p280 = scmp.eq.s32.totalorder %s32, 3
    %p281 = por %p279, %p280
    %p282 = scmp.ne.s32.totalorder %s271, %s272
    %p283 = scmp.eq.s32.totalorder %s32, 0
    %p284 = por %p282, %p283
    %p285 = scmp.ne.s32.totalorder %s271, %s272
    %p286 = scmp.eq.s32.totalorder %s33, 3
    %p287 = por %p285, %p286
    %p289 = scmp.ne.s32.totalorder %s272, %s288
    %p290 = scmp.eq.s32.totalorder %s33, 0
    %p291 = por %p289, %p290
    %s293 = sadd.s32 %s292, 1
    %p296 = scmp.eq.s32.totalorder %s27, 3
    %p297 = scmp.ne.s32.totalorder %s292, %s294
    %p298 = scmp.eq.s32.totalorder %s27, 0
    %p299 = por %p297, %p298
    %p300 = scmp.ne.s32.totalorder %s292, %s294
    %p301 = scmp.eq.s32.totalorder %s32, 3
    %p302 = por %p300, %p301
    %p303 = scmp.ne.s32.totalorder %s294, %s295
    %p304 = scmp.eq.s32.totalorder %s32, 0
    %p305 = por %p303, %p304
    %p306 = scmp.ne.s32.totalorder %s294, %s295
    %p307 = scmp.eq.s32.totalorder %s33, 3
    %p308 = por %p306, %p307
    %p310 = scmp.ne.s32.totalorder %s295, %s309
    %p311 = scmp.eq.s32.totalorder %s33, 0
    %p312 = por %p310, %p311
    %s314 = sadd.s32 %s313, 1
    %p317 = scmp.eq.s32.totalorder %s27, 3
    %p318 = scmp.ne.s32.totalorder %s313, %s315
    %p319 = scmp.eq.s32.totalorder %s27, 0
    %p320 = por %p318, %p319
    %p321 = scmp.ne.s32.totalorder %s313, %s315
    %p322 = scmp.eq.s32.totalorder %s32, 3
    %p323 = por %p321, %p322
    %p324 = scmp.ne.s32.totalorder %s315, %s316
    %p325 = scmp.eq.s32.totalorder %s32, 0
    %p326 = por %p324, %p325
    %p327 = scmp.ne.s32.totalorder %s315, %s316
    %p328 = scmp.eq.s32.totalorder %s33, 3
    %p329 = por %p327, %p328
    %p331 = scmp.ne.s32.totalorder %s316, %s330
    %p332 = scmp.eq.s32.totalorder %s33, 0
    %p333 = por %p331, %p332
    %p334 = scmp.le.s32.totalorder 1, %s27
    %p335 = scmp.lt.s32.totalorder %s27, 5
    %p336 = pnand %p334, %p335
    %p337 = pneg %p336
    // Predicated region
    $region9: #{attn_seq_decoder_steps.1} parent=5 // pred_check
      _
    $region10: #{attn_seq_decoder_steps.1} parent=5 // pred_check_branch
      %339 = sbr.rel (%p336) target = $region12
    $region11: #{attn_seq_decoder_steps.1} parent=5 // pred_region
      %s340 = ssub.s32 %s27, 1
      // Predicated region
      $region13: #{attn_seq_decoder_steps.1} parent=11 // pred_check
        %p341 = pneg %p48
      $region14: #{attn_seq_decoder_steps.1} parent=11 // pred_check_branch
        %343 = sbr.rel (%p341) target = $region16
      $region15: #{attn_seq_decoder_steps.1} parent=11 // pred_region
        _
      $region16: #{attn_seq_decoder_steps.1} parent=11 // pred_fallthru
        _
      // Predicated region
      $region17: #{attn_seq_decoder_steps.1} parent=11 // pred_check
        %p344 = pneg %p69
      $region18: #{attn_seq_decoder_steps.1} parent=11 // pred_check_branch
        %346 = sbr.rel (%p344) target = $region20
      $region19: #{attn_seq_decoder_steps.1} parent=11 // pred_region
        _
      $region20: #{attn_seq_decoder_steps.1} parent=11 // pred_fallthru
        _
      // Predicated region
      $region21: #{attn_seq_decoder_steps.1} parent=11 // pred_check
        %p347 = pneg %p90
      $region22: #{attn_seq_decoder_steps.1} parent=11 // pred_check_branch
        %349 = sbr.rel (%p347) target = $region24
      $region23: #{attn_seq_decoder_steps.1} parent=11 // pred_region
        _
      $region24: #{attn_seq_decoder_steps.1} parent=11 // pred_fallthru
        _
      // Predicated region
      $region25: #{attn_seq_decoder_steps.1} parent=11 // pred_check
        %p350 = pneg %p111
      $region26: #{attn_seq_decoder_steps.1} parent=11 // pred_check_branch
        %352 = sbr.rel (%p350) target = $region28
      $region27: #{attn_seq_decoder_steps.1} parent=11 // pred_region
        _
      $region28: #{attn_seq_decoder_steps.1} parent=11 // pred_fallthru
        _
      // Predicated region
      $region29: #{attn_seq_decoder_steps.1} parent=11 // pred_check
        %p353 = pneg %p132
      $region30: #{attn_seq_decoder_steps.1} parent=11 // pred_check_branch
        %355 = sbr.rel (%p353) target = $region32
      $region31: #{attn_seq_decoder_steps.1} parent=11 // pred_region
        _
      $region32: #{attn_seq_decoder_steps.1} parent=11 // pred_fallthru
        _
      // Predicated region
      $region33: #{attn_seq_decoder_steps.1} parent=11 // pred_check
        %p356 = pneg %p153
      $region34: #{attn_seq_decoder_steps.1} parent=11 // pred_check_branch
        %358 = sbr.rel (%p356) target = $region36
      $region35: #{attn_seq_decoder_steps.1} parent=11 // pred_region
        _
      $region36: #{attn_seq_decoder_steps.1} parent=11 // pred_fallthru
        _
      // Predicated region
      $region37: #{attn_seq_decoder_steps.1} parent=11 // pred_check
        %p359 = pneg %p174
      $region38: #{attn_seq_decoder_steps.1} parent=11 // pred_check_branch
        %361 = sbr.rel (%p359) target = $region40
      $region39: #{attn_seq_decoder_steps.1} parent=11 // pred_region
        _
      $region40: #{attn_seq_decoder_steps.1} parent=11 // pred_fallthru
        _
      // Predicated region
      $region41: #{attn_seq_decoder_steps.1} parent=11 // pred_check
        %p362 = pneg %p195
      $region42: #{attn_seq_decoder_steps.1} parent=11 // pred_check_branch
        %364 = sbr.rel (%p362) target = $region44
      $region43: #{attn_seq_decoder_steps.1} parent=11 // pred_region
        _
      $region44: #{attn_seq_decoder_steps.1} parent=11 // pred_fallthru
        _
      // Predicated region
      $region45: #{attn_seq_decoder_steps.1} parent=11 // pred_check
        %p365 = pneg %p216
      $region46: #{attn_seq_decoder_steps.1} parent=11 // pred_check_branch
        %367 = sbr.rel (%p365) target = $region48
      $region47: #{attn_seq_decoder_steps.1} parent=11 // pred_region
        _
      $region48: #{attn_seq_decoder_steps.1} parent=11 // pred_fallthru
        _
      // Predicated region
      $region49: #{attn_seq_decoder_steps.1} parent=11 // pred_check
        %p368 = pneg %p237
      $region50: #{attn_seq_decoder_steps.1} parent=11 // pred_check_branch
        %370 = sbr.rel (%p368) target = $region52
      $region51: #{attn_seq_decoder_steps.1} parent=11 // pred_region
        _
      $region52: #{attn_seq_decoder_steps.1} parent=11 // pred_fallthru
        _
      // Predicated region
      $region53: #{attn_seq_decoder_steps.1} parent=11 // pred_check
        %p371 = pneg %p258
      $region54: #{attn_seq_decoder_steps.1} parent=11 // pred_check_branch
        %373 = sbr.rel (%p371) target = $region56
      $region55: #{attn_seq_decoder_steps.1} parent=11 // pred_region
        _
      $region56: #{attn_seq_decoder_steps.1} parent=11 // pred_fallthru
        _
    $region12: #{attn_seq_decoder_steps.1} parent=5 // pred_fallthru
      _
    %p374 = scmp.lt.s32.totalorder %s27, 4
    // Predicated region
    $region57: #{attn_seq_decoder_steps.1} parent=5 // pred_check
      %p375 = pneg %p374
    $region58: #{attn_seq_decoder_steps.1} parent=5 // pred_check_branch
      %377 = sbr.rel (%p375) target = $region60
    $region59: #{attn_seq_decoder_steps.1} parent=5 // pred_region
      _
    $region60: #{attn_seq_decoder_steps.1} parent=5 // pred_fallthru
      _
    %p378 = scmp.le.s32.totalorder 1, %s27
    %p379 = scmp.lt.s32.totalorder %s27, 5
    %p380 = pnand %p378, %p379
    %p381 = pneg %p380
    // Predicated region
    $region61: #{attn_seq_decoder_steps.1} parent=5 // pred_check
      _
    $region62: #{attn_seq_decoder_steps.1} parent=5 // pred_check_branch
      %383 = sbr.rel (%p380) target = $region64
    $region63: #{attn_seq_decoder_steps.1} parent=5 // pred_region
      %s384 = ssub.s32 %s27, 1
      %p385 = pneg %p48
      %p386 = pneg %p45
      %p387 = pneg %p69
      %p388 = pneg %p66
      %p389 = pneg %p90
      %p390 = pneg %p87
      %p391 = pneg %p111
      %p392 = pneg %p108
      %p393 = pneg %p132
      %p394 = pneg %p129
      %p395 = pneg %p153
      %p396 = pneg %p150
      %p397 = pneg %p174
      %p398 = pneg %p171
      %p399 = pneg %p195
      %p400 = pneg %p192
      %p401 = pneg %p216
      %p402 = pneg %p213
      %p403 = pneg %p237
      %p404 = pneg %p234
      %p405 = pneg %p258
      %p406 = pneg %p255
      %p407 = pneg %p284
      %p408 = pneg %p281
      %p409 = scmp.lt.s32.totalorder %s32, 3
      %s410 = scalar_select %p409, %s32, 3
      %s411 = smul.addr %s410, 2
      %s412 = smul.addr %s411, 8
      %s413 = scalar_lea.vmem %s12, %s412
      %p414 = pneg %p305
      %p415 = pneg %p302
      %p416 = pneg %p326
      %p417 = pneg %p323
      %p418 = scmp.lt.s32.totalorder %s32, 3
      %s419 = scalar_select %p418, %s32, 3
      %s420 = smul.addr %s419, 2
      %s421 = smul.addr %s420, 8
      %s422 = scalar_lea.vmem %s12, %s421
      %p423 = scmp.eq.s32.totalorder %s32, 0
      // Predicated region
      $region65: #{attn_seq_decoder_steps.1} parent=63 // pred_check
        %p424 = pneg %p423
      $region66: #{attn_seq_decoder_steps.1} parent=63 // pred_check_branch
        %426 = sbr.rel (%p424) target = $region68
      $region67: #{attn_seq_decoder_steps.1} parent=63 // pred_region
        %v427 = vld [vmem:[%s2] sm:$0xff]
        %v428 = vld [vmem:[%s2 + $0x8] sm:$0xff]
        %vm429 = vcmask 261120
        %430 = vst.msk [vmem:[%s13] sm:$0xff] %vm429, %v427
        %431 = vst.msk [vmem:[%s13 + $0x8] sm:$0xff] %vm429, %v428
        %v432 = vld [vmem:[%s3] sm:$0xff]
        %v433 = vld [vmem:[%s3 + $0x8] sm:$0xff]
        %434 = vst.msk [vmem:[%s14] sm:$0xff] %vm429, %v432
        %435 = vst.msk [vmem:[%s14 + $0x8] sm:$0xff] %vm429, %v433
      $region68: #{attn_seq_decoder_steps.1} parent=63 // pred_fallthru
        _
      %s436 = smul.u32 %s32, 128
      %s437 = sld [smem:[#allocation3 + %s436]]
      %s438 = scalar_lea.vmem %s1, %s437
      %v439 = vld [vmem:[%s438] sm:$0x1]
      %s440 = sadd.s32 %s436, 1
      %s441 = sld [smem:[#allocation3 + %s440]]
      %s442 = scalar_lea.vmem %s1, %s441
      %v443 = vld [vmem:[%s442] sm:$0x1]
      %s444 = sadd.s32 %s436, 2
      %s445 = sld [smem:[#allocation3 + %s444]]
      %s446 = scalar_lea.vmem %s1, %s445
      %v447 = vld [vmem:[%s446] sm:$0x1]
      %s448 = sadd.s32 %s436, 3
      %s449 = sld [smem:[#allocation3 + %s448]]
      %s450 = scalar_lea.vmem %s1, %s449
      %v451 = vld [vmem:[%s450] sm:$0x1]
      %s452 = sadd.s32 %s436, 4
      %s453 = sld [smem:[#allocation3 + %s452]]
      %s454 = scalar_lea.vmem %s1, %s453
      %v455 = vld [vmem:[%s454] sm:$0x1]
      %s456 = sadd.s32 %s436, 5
      %s457 = sld [smem:[#allocation3 + %s456]]
      %s458 = scalar_lea.vmem %s1, %s457
      %v459 = vld [vmem:[%s458] sm:$0x1]
      %s460 = sadd.s32 %s436, 6
      %s461 = sld [smem:[#allocation3 + %s460]]
      %s462 = scalar_lea.vmem %s1, %s461
      %v463 = vld [vmem:[%s462] sm:$0x1]
      %s464 = sadd.s32 %s436, 7
      %s465 = sld [smem:[#allocation3 + %s464]]
      %s466 = scalar_lea.vmem %s1, %s465
      %v467 = vld [vmem:[%s466] sm:$0x1]
      %v469 = vrot.slane %v443, 7
      %v472 = vrot.slane %v447, 6
      %v475 = vrot.slane %v451, 5
      %v478 = vrot.slane %v455, 4
      %v481 = vrot.slane %v459, 3
      %v484 = vrot.slane %v463, 2
      %v487 = vrot.slane %v467, 1
      %vm489 = vcmask 1040384
      %v490 = vsel %vm489, %v439, %v469
      %vm491 = vcmask 1041408
      %v492 = vsel %vm491, %v490, %v472
      %vm493 = vcmask 1042432
      %v494 = vsel %vm493, %v492, %v475
      %vm495 = vcmask 1043456
      %v496 = vsel %vm495, %v494, %v478
      %vm497 = vcmask 1044480
      %v498 = vsel %vm497, %v496, %v481
      %vm499 = vcmask 1045504
      %v500 = vsel %vm499, %v498, %v484
      %vm501 = vcmask 1046528
      %v502 = vsel %vm501, %v500, %v487
      %v503 = vld [vmem:[%s13] sm:$0xff]
      %v504 = vld [vmem:[%s14] sm:$0xff]
      %v505 = vld [vmem:[%s5] sm:$0xff]
      %v506 = vld [vmem:[%s5 + $0x8] sm:$0xff]
      %v507 = vld [vmem:[%s5 + $0x10] sm:$0xff]
      %v508 = vld [vmem:[%s5 + $0x18] sm:$0xff]
      %v509 = vld [vmem:[%s6] sm:$0xff]
      %v510 = vld [vmem:[%s6 + $0x8] sm:$0xff]
      %v511 = vld [vmem:[%s6 + $0x10] sm:$0xff]
      %v512 = vld [vmem:[%s6 + $0x18] sm:$0xff]
      %vm513 = vcmask 261120
      %v515 = vsel %vm513, %v503, 0
      %517 = vmatprep.subr.mxu0 0.0
      %518 = vmatpush1.msra.mxu0 %v509
      %519 = vmatprep.subr.mxu0 0.0
      %520 = vmatpush1.msra.mxu0 %v510
      %521 = vmatprep.subr.mxu0 0.0
      %522 = vmatpush1.msra.mxu0 %v511
      %523 = vmatprep.subr.mxu0 0.0
      %524 = vmatpush1.msra.mxu0 %v512
      %525 = vmatprep.subr.mxu0 0.0
      %526 = vmatpush1.msra.mxu0 0.0
      %527 = vmatprep.subr.mxu0 0.0
      %528 = vmatpush1.msra.mxu0 0.0
      %529 = vmatprep.subr.mxu0 0.0
      %530 = vmatpush1.msra.mxu0 0.0
      %531 = vmatprep.subr.mxu0 0.0
      %532 = vmatpush1.msra.mxu0 0.0
      %533 = vmatprep.subr.mxu0 0.0
      %534 = vmatpush1.msra.mxu0 0.0
      %535 = vmatprep.subr.mxu0 0.0
      %536 = vmatpush1.msra.mxu0 0.0
      %537 = vmatprep.subr.mxu0 0.0
      %538 = vmatpush1.msra.mxu0 0.0
      %539 = vmatprep.subr.mxu0 0.0
      %540 = vmatpush1.msra.mxu0 0.0
      %541 = vmatprep.subr.mxu0 0.0
      %542 = vmatpush1.msra.mxu0 0.0
      %543 = vmatprep.subr.mxu0 0.0
      %544 = vmatpush1.msra.mxu0 0.0
      %545 = vmatprep.subr.mxu0 0.0
      %546 = vmatpush1.msra.mxu0 0.0
      %547 = vmatprep.subr.mxu0 0.0
      %548 = vmatpush1.msra.mxu0 0.0
      %549 = vmatprep.subr.mxu0 0.0
      %550 = vmatpush1.msra.mxu0 0.0
      %551 = vmatprep.subr.mxu0 0.0
      %552 = vmatpush1.msra.mxu0 0.0
      %553 = vmatprep.subr.mxu0 0.0
      %554 = vmatpush1.msra.mxu0 0.0
      %555 = vmatprep.subr.mxu0 0.0
      %556 = vmatpush1.msra.mxu0 0.0
      %557 = vmatprep.subr.mxu0 0.0
      %558 = vmatpush1.msra.mxu0 0.0
      %559 = vmatprep.subr.mxu0 0.0
      %560 = vmatpush1.msra.mxu0 0.0
      %561 = vmatprep.subr.mxu0 0.0
      %562 = vmatpush1.msra.mxu0 0.0
      %563 = vmatprep.subr.mxu0 0.0
      %564 = vmatpush1.msra.mxu0 0.0
      %565 = vmatprep.subr.mxu0 0.0
      %566 = vmatpush1.msra.mxu0 0.0
      %567 = vmatprep.subr.mxu0 0.0
      %568 = vmatpush1.msra.mxu0 0.0
      %569 = vmatprep.subr.mxu0 0.0
      %570 = vmatpush1.msra.mxu0 0.0
      %571 = vmatprep.subr.mxu0 0.0
      %572 = vmatpush1.msra.mxu0 0.0
      %573 = vmatprep.subr.mxu0 0.0
      %574 = vmatpush1.msra.mxu0 0.0
      %575 = vmatprep.subr.mxu0 0.0
      %576 = vmatpush1.msra.mxu0 0.0
      %577 = vmatprep.subr.mxu0 0.0
      %578 = vmatpush1.msra.mxu0 0.0
      %579 = vmatprep.subr.mxu0 0.0
      %580 = vmatpush1.msra.mxu0 0.0
      %581 = vmatprep.mubr.f32.mxu0 0.0
      %582 = vmatmul.mubr.f32.gmra.mrb[0].mxu0 %v515
      %v583 = vpop.f32.mrb[0].mxu0
      %v584 = vadd.f32 0.0, %v583
      %v585 = vpop.f32.mrb[0].mxu0
      %586 = vdwg.mxu0
      %v588 = vsel %vm513, %v502, 0
      %590 = vmatprep.subr.mxu0 0.0
      %591 = vmatpush1.msra.mxu0 %v505
      %592 = vmatprep.subr.mxu0 0.0
      %593 = vmatpush1.msra.mxu0 %v506
      %594 = vmatprep.subr.mxu0 0.0
      %595 = vmatpush1.msra.mxu0 %v507
      %596 = vmatprep.subr.mxu0 0.0
      %597 = vmatpush1.msra.mxu0 %v508
      %598 = vmatprep.subr.mxu0 0.0
      %599 = vmatpush1.msra.mxu0 0.0
      %600 = vmatprep.subr.mxu0 0.0
      %601 = vmatpush1.msra.mxu0 0.0
      %602 = vmatprep.subr.mxu0 0.0
      %603 = vmatpush1.msra.mxu0 0.0
      %604 = vmatprep.subr.mxu0 0.0
      %605 = vmatpush1.msra.mxu0 0.0
      %606 = vmatprep.subr.mxu0 0.0
      %607 = vmatpush1.msra.mxu0 0.0
      %608 = vmatprep.subr.mxu0 0.0
      %609 = vmatpush1.msra.mxu0 0.0
      %610 = vmatprep.subr.mxu0 0.0
      %611 = vmatpush1.msra.mxu0 0.0
      %612 = vmatprep.subr.mxu0 0.0
      %613 = vmatpush1.msra.mxu0 0.0
      %614 = vmatprep.subr.mxu0 0.0
      %615 = vmatpush1.msra.mxu0 0.0
      %616 = vmatprep.subr.mxu0 0.0
      %617 = vmatpush1.msra.mxu0 0.0
      %618 = vmatprep.subr.mxu0 0.0
      %619 = vmatpush1.msra.mxu0 0.0
      %620 = vmatprep.subr.mxu0 0.0
      %621 = vmatpush1.msra.mxu0 0.0
      %622 = vmatprep.subr.mxu0 0.0
      %623 = vmatpush1.msra.mxu0 0.0
      %624 = vmatprep.subr.mxu0 0.0
      %625 = vmatpush1.msra.mxu0 0.0
      %626 = vmatprep.subr.mxu0 0.0
      %627 = vmatpush1.msra.mxu0 0.0
      %628 = vmatprep.subr.mxu0 0.0
      %629 = vmatpush1.msra.mxu0 0.0
      %630 = vmatprep.subr.mxu0 0.0
      %631 = vmatpush1.msra.mxu0 0.0
      %632 = vmatprep.subr.mxu0 0.0
      %633 = vmatpush1.msra.mxu0 0.0
      %634 = vmatprep.subr.mxu0 0.0
      %635 = vmatpush1.msra.mxu0 0.0
      %636 = vmatprep.subr.mxu0 0.0
      %637 = vmatpush1.msra.mxu0 0.0
      %638 = vmatprep.subr.mxu0 0.0
      %639 = vmatpush1.msra.mxu0 0.0
      %640 = vmatprep.subr.mxu0 0.0
      %641 = vmatpush1.msra.mxu0 0.0
      %642 = vmatprep.subr.mxu0 0.0
      %643 = vmatpush1.msra.mxu0 0.0
      %644 = vmatprep.subr.mxu0 0.0
      %645 = vmatpush1.msra.mxu0 0.0
      %646 = vmatprep.subr.mxu0 0.0
      %647 = vmatpush1.msra.mxu0 0.0
      %648 = vmatprep.subr.mxu0 0.0
      %649 = vmatpush1.msra.mxu0 0.0
      %650 = vmatprep.subr.mxu0 0.0
      %651 = vmatpush1.msra.mxu0 0.0
      %652 = vmatprep.subr.mxu0 0.0
      %653 = vmatpush1.msra.mxu0 0.0
      %654 = vmatprep.mubr.f32.mxu0 0.0
      %655 = vmatmul.mubr.f32.gmra.mrb[0].mxu0 %v588
      %v656 = vpop.f32.mrb[0].mxu0
      %v657 = vadd.f32 %v584, %v656
      %v658 = vpop.f32.mrb[0].mxu0
      %659 = vdwg.mxu0
      %v660 = vld [vmem:[%s7] sm:$0x1]
      %v662 = vlaneseq
      %v663 = vshrl.u32 %v662, 7
      %v664 = vsub.s32 0, %v663
      %v665 = vrot.slane %v660, %v664
      %v667 = vadd.f32 %v657, %v665
      %v668 = vxor.u32 %v667, 2147483648
      %v669 = vmul.f32 %v668, 1.442695
      %v670 = vpow.pop %v669
      %v671 = vadd.f32 %v670, 1.0
      %v672 = vrcp.pop %v671
      %v673 = vmul.f32 1.0, %v672
      %v674 = vtanh.pop %v667
      %676 = vrot.lane.b32.xlu0 %v504, 32
      %v677 = vpop.permute.xlu0 %676
      %v679 = vmul.f32 %v673, %v677
      %681 = vrot.lane.b32.xlu0 %v674, 64
      %v682 = vpop.permute.xlu0 %681
      %v684 = vmul.f32 %v673, %v682
      %686 = vrot.lane.b32.xlu0 %v684, 32
      %v687 = vpop.permute.xlu0 %686
      %v689 = vadd.f32 %v679, %v687
      %v690 = vtanh.pop %v689
      %692 = vrot.lane.b32.xlu0 %v690, 64
      %v693 = vpop.permute.xlu0 %692
      %v695 = vmul.f32 %v673, %v693
      %697 = vrot.lane.b32.xlu0 %v695, 32
      %v698 = vpop.permute.xlu0 %697
      %700 = vst.msk [vmem:[%s13] sm:$0xff] %vm513, %v698
      %702 = vrot.lane.b32.xlu0 %v689, 96
      %v703 = vpop.permute.xlu0 %702
      %705 = vst.msk [vmem:[%s14] sm:$0xff] %vm513, %v703
      %s706 = scalar_lea.vmem %s13, 8
      %v707 = vld [vmem:[%s706] sm:$0xff]
      %s708 = scalar_lea.vmem %s14, 8
      %v709 = vld [vmem:[%s708] sm:$0xff]
      %s710 = scalar_lea.vmem %s5, 32
      %v711 = vld [vmem:[%s710] sm:$0xff]
      %v712 = vld [vmem:[%s710 + $0x8] sm:$0xff]
      %v713 = vld [vmem:[%s710 + $0x10] sm:$0xff]
      %v714 = vld [vmem:[%s710 + $0x18] sm:$0xff]
      %s715 = scalar_lea.vmem %s6, 32
      %v716 = vld [vmem:[%s715] sm:$0xff]
      %v717 = vld [vmem:[%s715 + $0x8] sm:$0xff]
      %v718 = vld [vmem:[%s715 + $0x10] sm:$0xff]
      %v719 = vld [vmem:[%s715 + $0x18] sm:$0xff]
      %v721 = vsel %vm513, %v707, 0
      %723 = vmatprep.subr.mxu0 0.0
      %724 = vmatpush1.msra.mxu0 %v716
      %725 = vmatprep.subr.mxu0 0.0
      %726 = vmatpush1.msra.mxu0 %v717
      %727 = vmatprep.subr.mxu0 0.0
      %728 = vmatpush1.msra.mxu0 %v718
      %729 = vmatprep.subr.mxu0 0.0
      %730 = vmatpush1.msra.mxu0 %v719
      %731 = vmatprep.subr.mxu0 0.0
      %732 = vmatpush1.msra.mxu0 0.0
      %733 = vmatprep.subr.mxu0 0.0
      %734 = vmatpush1.msra.mxu0 0.0
      %735 = vmatprep.subr.mxu0 0.0
      %736 = vmatpush1.msra.mxu0 0.0
      %737 = vmatprep.subr.mxu0 0.0
      %738 = vmatpush1.msra.mxu0 0.0
      %739 = vmatprep.subr.mxu0 0.0
      %740 = vmatpush1.msra.mxu0 0.0
      %741 = vmatprep.subr.mxu0 0.0
      %742 = vmatpush1.msra.mxu0 0.0
      %743 = vmatprep.subr.mxu0 0.0
      %744 = vmatpush1.msra.mxu0 0.0
      %745 = vmatprep.subr.mxu0 0.0
      %746 = vmatpush1.msra.mxu0 0.0
      %747 = vmatprep.subr.mxu0 0.0
      %748 = vmatpush1.msra.mxu0 0.0
      %749 = vmatprep.subr.mxu0 0.0
      %750 = vmatpush1.msra.mxu0 0.0
      %751 = vmatprep.subr.mxu0 0.0
      %752 = vmatpush1.msra.mxu0 0.0
      %753 = vmatprep.subr.mxu0 0.0
      %754 = vmatpush1.msra.mxu0 0.0
      %755 = vmatprep.subr.mxu0 0.0
      %756 = vmatpush1.msra.mxu0 0.0
      %757 = vmatprep.subr.mxu0 0.0
      %758 = vmatpush1.msra.mxu0 0.0
      %759 = vmatprep.subr.mxu0 0.0
      %760 = vmatpush1.msra.mxu0 0.0
      %761 = vmatprep.subr.mxu0 0.0
      %762 = vmatpush1.msra.mxu0 0.0
      %763 = vmatprep.subr.mxu0 0.0
      %764 = vmatpush1.msra.mxu0 0.0
      %765 = vmatprep.subr.mxu0 0.0
      %766 = vmatpush1.msra.mxu0 0.0
      %767 = vmatprep.subr.mxu0 0.0
      %768 = vmatpush1.msra.mxu0 0.0
      %769 = vmatprep.subr.mxu0 0.0
      %770 = vmatpush1.msra.mxu0 0.0
      %771 = vmatprep.subr.mxu0 0.0
      %772 = vmatpush1.msra.mxu0 0.0
      %773 = vmatprep.subr.mxu0 0.0
      %774 = vmatpush1.msra.mxu0 0.0
      %775 = vmatprep.subr.mxu0 0.0
      %776 = vmatpush1.msra.mxu0 0.0
      %777 = vmatprep.subr.mxu0 0.0
      %778 = vmatpush1.msra.mxu0 0.0
      %779 = vmatprep.subr.mxu0 0.0
      %780 = vmatpush1.msra.mxu0 0.0
      %781 = vmatprep.subr.mxu0 0.0
      %782 = vmatpush1.msra.mxu0 0.0
      %783 = vmatprep.subr.mxu0 0.0
      %784 = vmatpush1.msra.mxu0 0.0
      %785 = vmatprep.subr.mxu0 0.0
      %786 = vmatpush1.msra.mxu0 0.0
      %787 = vmatprep.mubr.f32.mxu0 0.0
      %788 = vmatmul.mubr.f32.gmra.mrb[0].mxu0 %v721
      %v789 = vpop.f32.mrb[0].mxu0
      %v790 = vadd.f32 0.0, %v789
      %v791 = vpop.f32.mrb[0].mxu0
      %792 = vdwg.mxu0
      %v793 = vsel %vm513, %v698, 0
      %795 = vmatprep.subr.mxu0 0.0
      %796 = vmatpush1.msra.mxu0 %v711
      %797 = vmatprep.subr.mxu0 0.0
      %798 = vmatpush1.msra.mxu0 %v712
      %799 = vmatprep.subr.mxu0 0.0
      %800 = vmatpush1.msra.mxu0 %v713
      %801 = vmatprep.subr.mxu0 0.0
      %802 = vmatpush1.msra.mxu0 %v714
      %803 = vmatprep.subr.mxu0 0.0
      %804 = vmatpush1.msra.mxu0 0.0
      %805 = vmatprep.subr.mxu0 0.0
      %806 = vmatpush1.msra.mxu0 0.0
      %807 = vmatprep.subr.mxu0 0.0
      %808 = vmatpush1.msra.mxu0 0.0
      %809 = vmatprep.subr.mxu0 0.0
      %810 = vmatpush1.msra.mxu0 0.0
      %811 = vmatprep.subr.mxu0 0.0
      %812 = vmatpush1.msra.mxu0 0.0
      %813 = vmatprep.subr.mxu0 0.0
      %814 = vmatpush1.msra.mxu0 0.0
      %815 = vmatprep.subr.mxu0 0.0
      %816 = vmatpush1.msra.mxu0 0.0
      %817 = vmatprep.subr.mxu0 0.0
      %818 = vmatpush1.msra.mxu0 0.0
      %819 = vmatprep.subr.mxu0 0.0
      %820 = vmatpush1.msra.mxu0 0.0
      %821 = vmatprep.subr.mxu0 0.0
      %822 = vmatpush1.msra.mxu0 0.0
      %823 = vmatprep.subr.mxu0 0.0
      %824 = vmatpush1.msra.mxu0 0.0
      %825 = vmatprep.subr.mxu0 0.0
      %826 = vmatpush1.msra.mxu0 0.0
      %827 = vmatprep.subr.mxu0 0.0
      %828 = vmatpush1.msra.mxu0 0.0
      %829 = vmatprep.subr.mxu0 0.0
      %830 = vmatpush1.msra.mxu0 0.0
      %831 = vmatprep.subr.mxu0 0.0
      %832 = vmatpush1.msra.mxu0 0.0
      %833 = vmatprep.subr.mxu0 0.0
      %834 = vmatpush1.msra.mxu0 0.0
      %835 = vmatprep.subr.mxu0 0.0
      %836 = vmatpush1.msra.mxu0 0.0
      %837 = vmatprep.subr.mxu0 0.0
      %838 = vmatpush1.msra.mxu0 0.0
      %839 = vmatprep.subr.mxu0 0.0
      %840 = vmatpush1.msra.mxu0 0.0
      %841 = vmatprep.subr.mxu0 0.0
      %842 = vmatpush1.msra.mxu0 0.0
      %843 = vmatprep.subr.mxu0 0.0
      %844 = vmatpush1.msra.mxu0 0.0
      %845 = vmatprep.subr.mxu0 0.0
      %846 = vmatpush1.msra.mxu0 0.0
      %847 = vmatprep.subr.mxu0 0.0
      %848 = vmatpush1.msra.mxu0 0.0
      %849 = vmatprep.subr.mxu0 0.0
      %850 = vmatpush1.msra.mxu0 0.0
      %851 = vmatprep.subr.mxu0 0.0
      %852 = vmatpush1.msra.mxu0 0.0
      %853 = vmatprep.subr.mxu0 0.0
      %854 = vmatpush1.msra.mxu0 0.0
      %855 = vmatprep.subr.mxu0 0.0
      %856 = vmatpush1.msra.mxu0 0.0
      %857 = vmatprep.subr.mxu0 0.0
      %858 = vmatpush1.msra.mxu0 0.0
      %859 = vmatprep.mubr.f32.mxu0 0.0
      %860 = vmatmul.mubr.f32.gmra.mrb[0].mxu0 %v793
      %v861 = vpop.f32.mrb[0].mxu0
      %v862 = vadd.f32 %v790, %v861
      %v863 = vpop.f32.mrb[0].mxu0
      %864 = vdwg.mxu0
      %s865 = scalar_lea.vmem %s7, 1
      %v866 = vld [vmem:[%s865] sm:$0x1]
      %v868 = vlaneseq
      %v869 = vshrl.u32 %v868, 7
      %v870 = vsub.s32 0, %v869
      %v871 = vrot.slane %v866, %v870
      %v873 = vadd.f32 %v862, %v871
      %v874 = vxor.u32 %v873, 2147483648
      %v875 = vmul.f32 %v874, 1.442695
      %v876 = vpow.pop %v875
      %v877 = vadd.f32 %v876, 1.0
      %v878 = vrcp.pop %v877
      %v879 = vmul.f32 1.0, %v878
      %v880 = vtanh.pop %v873
      %882 = vrot.lane.b32.xlu0 %v709, 32
      %v883 = vpop.permute.xlu0 %882
      %v885 = vmul.f32 %v879, %v883
      %887 = vrot.lane.b32.xlu0 %v880, 64
      %v888 = vpop.permute.xlu0 %887
      %v890 = vmul.f32 %v879, %v888
      %892 = vrot.lane.b32.xlu0 %v890, 32
      %v893 = vpop.permute.xlu0 %892
      %v895 = vadd.f32 %v885, %v893
      %v896 = vtanh.pop %v895
      %898 = vrot.lane.b32.xlu0 %v896, 64
      %v899 = vpop.permute.xlu0 %898
      %v901 = vmul.f32 %v879, %v899
      %903 = vrot.lane.b32.xlu0 %v901, 32
      %v904 = vpop.permute.xlu0 %903
      %906 = vst.msk [vmem:[%s706] sm:$0xff] %vm513, %v904
      %908 = vrot.lane.b32.xlu0 %v895, 96
      %v909 = vpop.permute.xlu0 %908
      %911 = vst.msk [vmem:[%s708] sm:$0xff] %vm513, %v909
      %v912 = vld [vmem:[%s4] sm:$0xff]
      %v913 = vld [vmem:[%s4 + $0x8] sm:$0xff]
      %v914 = vld [vmem:[%s4 + $0x10] sm:$0xff]
      %v915 = vld [vmem:[%s4 + $0x18] sm:$0xff]
      %v916 = vld [vmem:[%s4 + $0x20] sm:$0xff]
      %v917 = vld [vmem:[%s4 + $0x28] sm:$0xff]
      %v918 = vld [vmem:[%s4 + $0x30] sm:$0xff]
      %v919 = vld [vmem:[%s4 + $0x38] sm:$0xff]
      %v920 = vcombine.high %v901, %v901
      %v922 = vunpack.c.l.s4 1966171168
      %v923 = vunpack.c.0.s8 %v922
      %v924 = vlaneseq
      %v925 = vshrl.u32 %v924, 7
      %v926 = vsub.s32 %v923, %v925
      %v927 = vrot.slane %v901, %v926
      %v929 = vunpack.c.l.s4 1966171168
      %v930 = vunpack.c.0.s8 %v929
      %v931 = vlaneseq
      %v932 = vshrl.u32 %v931, 7
      %v933 = vsub.s32 %v930, %v932
      %v934 = vrot.slane %v920, %v933
      %v935 = vcombine.high %v927, %v927
      %v936 = vcombine.high %v934, %v934
      %v938 = vunpack.c.l.s4 1966171168
      %v939 = vunpack.c.0.s8 %v938
      %v940 = vlaneseq
      %v941 = vshrl.u32 %v940, 7
      %v942 = vsub.s32 %v939, %v941
      %v943 = vrot.slane %v927, %v942
      %v945 = vunpack.c.l.s4 1966171168
      %v946 = vunpack.c.0.s8 %v945
      %v947 = vlaneseq
      %v948 = vshrl.u32 %v947, 7
      %v949 = vsub.s32 %v946, %v948
      %v950 = vrot.slane %v934, %v949
      %v952 = vunpack.c.l.s4 1966171168
      %v953 = vunpack.c.0.s8 %v952
      %v954 = vlaneseq
      %v955 = vshrl.u32 %v954, 7
      %v956 = vsub.s32 %v953, %v955
      %v957 = vrot.slane %v935, %v956
      %v959 = vunpack.c.l.s4 1966171168
      %v960 = vunpack.c.0.s8 %v959
      %v961 = vlaneseq
      %v962 = vshrl.u32 %v961, 7
      %v963 = vsub.s32 %v960, %v962
      %v964 = vrot.slane %v936, %v963
      %v965 = vcombine.high %v943, %v943
      %v966 = vcombine.high %v950, %v950
      %v967 = vcombine.high %v957, %v957
      %v968 = vcombine.high %v964, %v964
      %v969 = vlaneseq
      %v970 = vshrl.u32 %v969, 7
      %v971 = vsub.s32 0, %v970
      %v972 = vrot.slane %v943, %v971
      %973 = vrot.lane.b32.xlu0 %v972, 32
      %v974 = vpop.permute.xlu0 %973
      %v975 = vsel %vm513, %v974, 0
      %v978 = vsel %vm513, %v912, 0
      %980 = vmatprep.subr.mxu0 0.0
      %981 = vmatpush1.xpose.msra.mxu0 %v978
      %982 = vmatprep.subr.mxu0 0.0
      %983 = vmatpush1.xpose.msra.mxu0 0.0
      %984 = vmatprep.subr.mxu0 0.0
      %985 = vmatpush1.xpose.msra.mxu0 0.0
      %986 = vmatprep.subr.mxu0 0.0
      %987 = vmatpush1.xpose.msra.mxu0 0.0
      %988 = vmatprep.subr.mxu0 0.0
      %989 = vmatpush1.xpose.msra.mxu0 0.0
      %990 = vmatprep.subr.mxu0 0.0
      %991 = vmatpush1.xpose.msra.mxu0 0.0
      %992 = vmatprep.subr.mxu0 0.0
      %993 = vmatpush1.xpose.msra.mxu0 0.0
      %994 = vmatprep.subr.mxu0 0.0
      %995 = vmatpush1.xpose.msra.mxu0 0.0
      %996 = vmatprep.subr.mxu0 0.0
      %997 = vmatpush1.xpose.msra.mxu0 0.0
      %998 = vmatprep.subr.mxu0 0.0
      %999 = vmatpush1.xpose.msra.mxu0 0.0
      %1000 = vmatprep.subr.mxu0 0.0
      %1001 = vmatpush1.xpose.msra.mxu0 0.0
      %1002 = vmatprep.subr.mxu0 0.0
      %1003 = vmatpush1.xpose.msra.mxu0 0.0
      %1004 = vmatprep.subr.mxu0 0.0
      %1005 = vmatpush1.xpose.msra.mxu0 0.0
      %1006 = vmatprep.subr.mxu0 0.0
      %1007 = vmatpush1.xpose.msra.mxu0 0.0
      %1008 = vmatprep.subr.mxu0 0.0
      %1009 = vmatpush1.xpose.msra.mxu0 0.0
      %1010 = vmatprep.subr.mxu0 0.0
      %1011 = vmatpush1.xpose.msra.mxu0 0.0
      %1012 = vmatprep.subr.mxu0 0.0
      %1013 = vmatpush1.xpose.msra.mxu0 0.0
      %1014 = vmatprep.subr.mxu0 0.0
      %1015 = vmatpush1.xpose.msra.mxu0 0.0
      %1016 = vmatprep.subr.mxu0 0.0
      %1017 = vmatpush1.xpose.msra.mxu0 0.0
      %1018 = vmatprep.subr.mxu0 0.0
      %1019 = vmatpush1.xpose.msra.mxu0 0.0
      %1020 = vmatprep.subr.mxu0 0.0
      %1021 = vmatpush1.xpose.msra.mxu0 0.0
      %1022 = vmatprep.subr.mxu0 0.0
      %1023 = vmatpush1.xpose.msra.mxu0 0.0
      %1024 = vmatprep.subr.mxu0 0.0
      %1025 = vmatpush1.xpose.msra.mxu0 0.0
      %1026 = vmatprep.subr.mxu0 0.0
      %1027 = vmatpush1.xpose.msra.mxu0 0.0
      %1028 = vmatprep.subr.mxu0 0.0
      %1029 = vmatpush1.xpose.msra.mxu0 0.0
      %1030 = vmatprep.subr.mxu0 0.0
      %1031 = vmatpush1.xpose.msra.mxu0 0.0
      %1032 = vmatprep.subr.mxu0 0.0
      %1033 = vmatpush1.xpose.msra.mxu0 0.0
      %1034 = vmatprep.subr.mxu0 0.0
      %1035 = vmatpush1.xpose.msra.mxu0 0.0
      %1036 = vmatprep.subr.mxu0 0.0
      %1037 = vmatpush1.xpose.msra.mxu0 0.0
      %1038 = vmatprep.subr.mxu0 0.0
      %1039 = vmatpush1.xpose.msra.mxu0 0.0
      %1040 = vmatprep.subr.mxu0 0.0
      %1041 = vmatpush1.xpose.msra.mxu0 0.0
      %1042 = vmatprep.subr.mxu0 0.0
      %1043 = vmatpush1.xpose.msra.mxu0 0.0
      %1044 = vmatprep.mubr.f32.mxu0 0.0
      %1045 = vmatmul.mubr.f32.gmra.mrb[0].mxu0 %v975
      %v1046 = vpop.f32.mrb[0].mxu0
      %v1047 = vadd.f32 0.0, %v1046
      %v1048 = vpop.f32.mrb[0].mxu0
      %1049 = vdwg.mxu0
      %v1050 = vlaneseq
      %v1051 = vshrl.u32 %v1050, 7
      %v1052 = vsub.s32 0, %v1051
      %v1053 = vrot.slane %v957, %v1052
      %1054 = vrot.lane.b32.xlu0 %v1053, 32
      %v1055 = vpop.permute.xlu0 %1054
      %v1056 = vsel %vm513, %v1055, 0
      %v1059 = vsel %vm513, %v913, 0
      %1061 = vmatprep.subr.mxu0 0.0
      %1062 = vmatpush1.xpose.msra.mxu0 %v1059
      %1063 = vmatprep.subr.mxu0 0.0
      %1064 = vmatpush1.xpose.msra.mxu0 0.0
      %1065 = vmatprep.subr.mxu0 0.0
      %1066 = vmatpush1.xpose.msra.mxu0 0.0
      %1067 = vmatprep.subr.mxu0 0.0
      %1068 = vmatpush1.xpose.msra.mxu0 0.0
      %1069 = vmatprep.subr.mxu0 0.0
      %1070 = vmatpush1.xpose.msra.mxu0 0.0
      %1071 = vmatprep.subr.mxu0 0.0
      %1072 = vmatpush1.xpose.msra.mxu0 0.0
      %1073 = vmatprep.subr.mxu0 0.0
      %1074 = vmatpush1.xpose.msra.mxu0 0.0
      %1075 = vmatprep.subr.mxu0 0.0
      %1076 = vmatpush1.xpose.msra.mxu0 0.0
      %1077 = vmatprep.subr.mxu0 0.0
      %1078 = vmatpush1.xpose.msra.mxu0 0.0
      %1079 = vmatprep.subr.mxu0 0.0
      %1080 = vmatpush1.xpose.msra.mxu0 0.0
      %1081 = vmatprep.subr.mxu0 0.0
      %1082 = vmatpush1.xpose.msra.mxu0 0.0
      %1083 = vmatprep.subr.mxu0 0.0
      %1084 = vmatpush1.xpose.msra.mxu0 0.0
      %1085 = vmatprep.subr.mxu0 0.0
      %1086 = vmatpush1.xpose.msra.mxu0 0.0
      %1087 = vmatprep.subr.mxu0 0.0
      %1088 = vmatpush1.xpose.msra.mxu0 0.0
      %1089 = vmatprep.subr.mxu0 0.0
      %1090 = vmatpush1.xpose.msra.mxu0 0.0
      %1091 = vmatprep.subr.mxu0 0.0
      %1092 = vmatpush1.xpose.msra.mxu0 0.0
      %1093 = vmatprep.subr.mxu0 0.0
      %1094 = vmatpush1.xpose.msra.mxu0 0.0
      %1095 = vmatprep.subr.mxu0 0.0
      %1096 = vmatpush1.xpose.msra.mxu0 0.0
      %1097 = vmatprep.subr.mxu0 0.0
      %1098 = vmatpush1.xpose.msra.mxu0 0.0
      %1099 = vmatprep.subr.mxu0 0.0
      %1100 = vmatpush1.xpose.msra.mxu0 0.0
      %1101 = vmatprep.subr.mxu0 0.0
      %1102 = vmatpush1.xpose.msra.mxu0 0.0
      %1103 = vmatprep.subr.mxu0 0.0
      %1104 = vmatpush1.xpose.msra.mxu0 0.0
      %1105 = vmatprep.subr.mxu0 0.0
      %1106 = vmatpush1.xpose.msra.mxu0 0.0
      %1107 = vmatprep.subr.mxu0 0.0
      %1108 = vmatpush1.xpose.msra.mxu0 0.0
      %1109 = vmatprep.subr.mxu0 0.0
      %1110 = vmatpush1.xpose.msra.mxu0 0.0
      %1111 = vmatprep.subr.mxu0 0.0
      %1112 = vmatpush1.xpose.msra.mxu0 0.0
      %1113 = vmatprep.subr.mxu0 0.0
      %1114 = vmatpush1.xpose.msra.mxu0 0.0
      %1115 = vmatprep.subr.mxu0 0.0
      %1116 = vmatpush1.xpose.msra.mxu0 0.0
      %1117 = vmatprep.subr.mxu0 0.0
      %1118 = vmatpush1.xpose.msra.mxu0 0.0
      %1119 = vmatprep.subr.mxu0 0.0
      %1120 = vmatpush1.xpose.msra.mxu0 0.0
      %1121 = vmatprep.subr.mxu0 0.0
      %1122 = vmatpush1.xpose.msra.mxu0 0.0
      %1123 = vmatprep.subr.mxu0 0.0
      %1124 = vmatpush1.xpose.msra.mxu0 0.0
      %1125 = vmatprep.mubr.f32.mxu0 0.0
      %1126 = vmatmul.mubr.f32.gmra.mrb[0].mxu0 %v1056
      %v1127 = vpop.f32.mrb[0].mxu0
      %v1128 = vadd.f32 0.0, %v1127
      %v1129 = vpop.f32.mrb[0].mxu0
      %1130 = vdwg.mxu0
      %v1131 = vlaneseq
      %v1132 = vshrl.u32 %v1131, 7
      %v1133 = vsub.s32 0, %v1132
      %v1134 = vrot.slane %v965, %v1133
      %1135 = vrot.lane.b32.xlu0 %v1134, 32
      %v1136 = vpop.permute.xlu0 %1135
      %v1137 = vsel %vm513, %v1136, 0
      %v1140 = vsel %vm513, %v914, 0
      %1142 = vmatprep.subr.mxu0 0.0
      %1143 = vmatpush1.xpose.msra.mxu0 %v1140
      %1144 = vmatprep.subr.mxu0 0.0
      %1145 = vmatpush1.xpose.msra.mxu0 0.0
      %1146 = vmatprep.subr.mxu0 0.0
      %1147 = vmatpush1.xpose.msra.mxu0 0.0
      %1148 = vmatprep.subr.mxu0 0.0
      %1149 = vmatpush1.xpose.msra.mxu0 0.0
      %1150 = vmatprep.subr.mxu0 0.0
      %1151 = vmatpush1.xpose.msra.mxu0 0.0
      %1152 = vmatprep.subr.mxu0 0.0
      %1153 = vmatpush1.xpose.msra.mxu0 0.0
      %1154 = vmatprep.subr.mxu0 0.0
      %1155 = vmatpush1.xpose.msra.mxu0 0.0
      %1156 = vmatprep.subr.mxu0 0.0
      %1157 = vmatpush1.xpose.msra.mxu0 0.0
      %1158 = vmatprep.subr.mxu0 0.0
      %1159 = vmatpush1.xpose.msra.mxu0 0.0
      %1160 = vmatprep.subr.mxu0 0.0
      %1161 = vmatpush1.xpose.msra.mxu0 0.0
      %1162 = vmatprep.subr.mxu0 0.0
      %1163 = vmatpush1.xpose.msra.mxu0 0.0
      %1164 = vmatprep.subr.mxu0 0.0
      %1165 = vmatpush1.xpose.msra.mxu0 0.0
      %1166 = vmatprep.subr.mxu0 0.0
      %1167 = vmatpush1.xpose.msra.mxu0 0.0
      %1168 = vmatprep.subr.mxu0 0.0
      %1169 = vmatpush1.xpose.msra.mxu0 0.0
      %1170 = vmatprep.subr.mxu0 0.0
      %1171 = vmatpush1.xpose.msra.mxu0 0.0
      %1172 = vmatprep.subr.mxu0 0.0
      %1173 = vmatpush1.xpose.msra.mxu0 0.0
      %1174 = vmatprep.subr.mxu0 0.0
      %1175 = vmatpush1.xpose.msra.mxu0 0.0
      %1176 = vmatprep.subr.mxu0 0.0
      %1177 = vmatpush1.xpose.msra.mxu0 0.0
      %1178 = vmatprep.subr.mxu0 0.0
      %1179 = vmatpush1.xpose.msra.mxu0 0.0
      %1180 = vmatprep.subr.mxu0 0.0
      %1181 = vmatpush1.xpose.msra.mxu0 0.0
      %1182 = vmatprep.subr.mxu0 0.0
      %1183 = vmatpush1.xpose.msra.mxu0 0.0
      %1184 = vmatprep.subr.mxu0 0.0
      %1185 = vmatpush1.xpose.msra.mxu0 0.0
      %1186 = vmatprep.subr.mxu0 0.0
      %1187 = vmatpush1.xpose.msra.mxu0 0.0
      %1188 = vmatprep.subr.mxu0 0.0
      %1189 = vmatpush1.xpose.msra.mxu0 0.0
      %1190 = vmatprep.subr.mxu0 0.0
      %1191 = vmatpush1.xpose.msra.mxu0 0.0
      %1192 = vmatprep.subr.mxu0 0.0
      %1193 = vmatpush1.xpose.msra.mxu0 0.0
      %1194 = vmatprep.subr.mxu0 0.0
      %1195 = vmatpush1.xpose.msra.mxu0 0.0
      %1196 = vmatprep.subr.mxu0 0.0
      %1197 = vmatpush1.xpose.msra.mxu0 0.0
      %1198 = vmatprep.subr.mxu0 0.0
      %1199 = vmatpush1.xpose.msra.mxu0 0.0
      %1200 = vmatprep.subr.mxu0 0.0
      %1201 = vmatpush1.xpose.msra.mxu0 0.0
      %1202 = vmatprep.subr.mxu0 0.0
      %1203 = vmatpush1.xpose.msra.mxu0 0.0
      %1204 = vmatprep.subr.mxu0 0.0
      %1205 = vmatpush1.xpose.msra.mxu0 0.0
      %1206 = vmatprep.mubr.f32.mxu0 0.0
      %1207 = vmatmul.mubr.f32.gmra.mrb[0].mxu0 %v1137
      %v1208 = vpop.f32.mrb[0].mxu0
      %v1209 = vadd.f32 0.0, %v1208
      %v1210 = vpop.f32.mrb[0].mxu0
      %1211 = vdwg.mxu0
      %v1212 = vlaneseq
      %v1213 = vshrl.u32 %v1212, 7
      %v1214 = vsub.s32 0, %v1213
      %v1215 = vrot.slane %v967, %v1214
      %1216 = vrot.lane.b32.xlu0 %v1215, 32
      %v1217 = vpop.permute.xlu0 %1216
      %v1218 = vsel %vm513, %v1217, 0
      %v1221 = vsel %vm513, %v915, 0
      %1223 = vmatprep.subr.mxu0 0.0
      %1224 = vmatpush1.xpose.msra.mxu0 %v1221
      %1225 = vmatprep.subr.mxu0 0.0
      %1226 = vmatpush1.xpose.msra.mxu0 0.0
      %1227 = vmatprep.subr.mxu0 0.0
      %1228 = vmatpush1.xpose.msra.mxu0 0.0
      %1229 = vmatprep.subr.mxu0 0.0
      %1230 = vmatpush1.xpose.msra.mxu0 0.0
      %1231 = vmatprep.subr.mxu0 0.0
      %1232 = vmatpush1.xpose.msra.mxu0 0.0
      %1233 = vmatprep.subr.mxu0 0.0
      %1234 = vmatpush1.xpose.msra.mxu0 0.0
      %1235 = vmatprep.subr.mxu0 0.0
      %1236 = vmatpush1.xpose.msra.mxu0 0.0
      %1237 = vmatprep.subr.mxu0 0.0
      %1238 = vmatpush1.xpose.msra.mxu0 0.0
      %1239 = vmatprep.subr.mxu0 0.0
      %1240 = vmatpush1.xpose.msra.mxu0 0.0
      %1241 = vmatprep.subr.mxu0 0.0
      %1242 = vmatpush1.xpose.msra.mxu0 0.0
      %1243 = vmatprep.subr.mxu0 0.0
      %1244 = vmatpush1.xpose.msra.mxu0 0.0
      %1245 = vmatprep.subr.mxu0 0.0
      %1246 = vmatpush1.xpose.msra.mxu0 0.0
      %1247 = vmatprep.subr.mxu0 0.0
      %1248 = vmatpush1.xpose.msra.mxu0 0.0
      %1249 = vmatprep.subr.mxu0 0.0
      %1250 = vmatpush1.xpose.msra.mxu0 0.0
      %1251 = vmatprep.subr.mxu0 0.0
      %1252 = vmatpush1.xpose.msra.mxu0 0.0
      %1253 = vmatprep.subr.mxu0 0.0
      %1254 = vmatpush1.xpose.msra.mxu0 0.0
      %1255 = vmatprep.subr.mxu0 0.0
      %1256 = vmatpush1.xpose.msra.mxu0 0.0
      %1257 = vmatprep.subr.mxu0 0.0
      %1258 = vmatpush1.xpose.msra.mxu0 0.0
      %1259 = vmatprep.subr.mxu0 0.0
      %1260 = vmatpush1.xpose.msra.mxu0 0.0
      %1261 = vmatprep.subr.mxu0 0.0
      %1262 = vmatpush1.xpose.msra.mxu0 0.0
      %1263 = vmatprep.subr.mxu0 0.0
      %1264 = vmatpush1.xpose.msra.mxu0 0.0
      %1265 = vmatprep.subr.mxu0 0.0
      %1266 = vmatpush1.xpose.msra.mxu0 0.0
      %1267 = vmatprep.subr.mxu0 0.0
      %1268 = vmatpush1.xpose.msra.mxu0 0.0
      %1269 = vmatprep.subr.mxu0 0.0
      %1270 = vmatpush1.xpose.msra.mxu0 0.0
      %1271 = vmatprep.subr.mxu0 0.0
      %1272 = vmatpush1.xpose.msra.mxu0 0.0
      %1273 = vmatprep.subr.mxu0 0.0
      %1274 = vmatpush1.xpose.msra.mxu0 0.0
      %1275 = vmatprep.subr.mxu0 0.0
      %1276 = vmatpush1.xpose.msra.mxu0 0.0
      %1277 = vmatprep.subr.mxu0 0.0
      %1278 = vmatpush1.xpose.msra.mxu0 0.0
      %1279 = vmatprep.subr.mxu0 0.0
      %1280 = vmatpush1.xpose.msra.mxu0 0.0
      %1281 = vmatprep.subr.mxu0 0.0
      %1282 = vmatpush1.xpose.msra.mxu0 0.0
      %1283 = vmatprep.subr.mxu0 0.0
      %1284 = vmatpush1.xpose.msra.mxu0 0.0
      %1285 = vmatprep.subr.mxu0 0.0
      %1286 = vmatpush1.xpose.msra.mxu0 0.0
      %1287 = vmatprep.mubr.f32.mxu0 0.0
      %1288 = vmatmul.mubr.f32.gmra.mrb[0].mxu0 %v1218
      %v1289 = vpop.f32.mrb[0].mxu0
      %v1290 = vadd.f32 0.0, %v1289
      %v1291 = vpop.f32.mrb[0].mxu0
      %1292 = vdwg.mxu0
      %v1293 = vlaneseq
      %v1294 = vshrl.u32 %v1293, 7
      %v1295 = vsub.s32 0, %v1294
      %v1296 = vrot.slane %v950, %v1295
      %1297 = vrot.lane.b32.xlu0 %v1296, 32
      %v1298 = vpop.permute.xlu0 %1297
      %v1299 = vsel %vm513, %v1298, 0
      %v1302 = vsel %vm513, %v916, 0
      %1304 = vmatprep.subr.mxu0 0.0
      %1305 = vmatpush1.xpose.msra.mxu0 %v1302
      %1306 = vmatprep.subr.mxu0 0.0
      %1307 = vmatpush1.xpose.msra.mxu0 0.0
      %1308 = vmatprep.subr.mxu0 0.0
      %1309 = vmatpush1.xpose.msra.mxu0 0.0
      %1310 = vmatprep.subr.mxu0 0.0
      %1311 = vmatpush1.xpose.msra.mxu0 0.0
      %1312 = vmatprep.subr.mxu0 0.0
      %1313 = vmatpush1.xpose.msra.mxu0 0.0
      %1314 = vmatprep.subr.mxu0 0.0
      %1315 = vmatpush1.xpose.msra.mxu0 0.0
      %1316 = vmatprep.subr.mxu0 0.0
      %1317 = vmatpush1.xpose.msra.mxu0 0.0
      %1318 = vmatprep.subr.mxu0 0.0
      %1319 = vmatpush1.xpose.msra.mxu0 0.0
      %1320 = vmatprep.subr.mxu0 0.0
      %1321 = vmatpush1.xpose.msra.mxu0 0.0
      %1322 = vmatprep.subr.mxu0 0.0
      %1323 = vmatpush1.xpose.msra.mxu0 0.0
      %1324 = vmatprep.subr.mxu0 0.0
      %1325 = vmatpush1.xpose.msra.mxu0 0.0
      %1326 = vmatprep.subr.mxu0 0.0
      %1327 = vmatpush1.xpose.msra.mxu0 0.0
      %1328 = vmatprep.subr.mxu0 0.0
      %1329 = vmatpush1.xpose.msra.mxu0 0.0
      %1330 = vmatprep.subr.mxu0 0.0
      %1331 = vmatpush1.xpose.msra.mxu0 0.0
      %1332 = vmatprep.subr.mxu0 0.0
      %1333 = vmatpush1.xpose.msra.mxu0 0.0
      %1334 = vmatprep.subr.mxu0 0.0
      %1335 = vmatpush1.xpose.msra.mxu0 0.0
      %1336 = vmatprep.subr.mxu0 0.0
      %1337 = vmatpush1.xpose.msra.mxu0 0.0
      %1338 = vmatprep.subr.mxu0 0.0
      %1339 = vmatpush1.xpose.msra.mxu0 0.0
      %1340 = vmatprep.subr.mxu0 0.0
      %1341 = vmatpush1.xpose.msra.mxu0 0.0
      %1342 = vmatprep.subr.mxu0 0.0
      %1343 = vmatpush1.xpose.msra.mxu0 0.0
      %1344 = vmatprep.subr.mxu0 0.0
      %1345 = vmatpush1.xpose.msra.mxu0 0.0
      %1346 = vmatprep.subr.mxu0 0.0
      %1347 = vmatpush1.xpose.msra.mxu0 0.0
      %1348 = vmatprep.subr.mxu0 0.0
      %1349 = vmatpush1.xpose.msra.mxu0 0.0
      %1350 = vmatprep.subr.mxu0 0.0
      %1351 = vmatpush1.xpose.msra.mxu0 0.0
      %1352 = vmatprep.subr.mxu0 0.0
      %1353 = vmatpush1.xpose.msra.mxu0 0.0
      %1354 = vmatprep.subr.mxu0 0.0
      %1355 = vmatpush1.xpose.msra.mxu0 0.0
      %1356 = vmatprep.subr.mxu0 0.0
      %1357 = vmatpush1.xpose.msra.mxu0 0.0
      %1358 = vmatprep.subr.mxu0 0.0
      %1359 = vmatpush1.xpose.msra.mxu0 0.0
      %1360 = vmatprep.subr.mxu0 0.0
      %1361 = vmatpush1.xpose.msra.mxu0 0.0
      %1362 = vmatprep.subr.mxu0 0.0
      %1363 = vmatpush1.xpose.msra.mxu0 0.0
      %1364 = vmatprep.subr.mxu0 0.0
      %1365 = vmatpush1.xpose.msra.mxu0 0.0
      %1366 = vmatprep.subr.mxu0 0.0
      %1367 = vmatpush1.xpose.msra.mxu0 0.0
      %1368 = vmatprep.mubr.f32.mxu0 0.0
      %1369 = vmatmul.mubr.f32.gmra.mrb[0].mxu0 %v1299
      %v1370 = vpop.f32.mrb[0].mxu0
      %v1371 = vadd.f32 0.0, %v1370
      %v1372 = vpop.f32.mrb[0].mxu0
      %1373 = vdwg.mxu0
      %v1374 = vlaneseq
      %v1375 = vshrl.u32 %v1374, 7
      %v1376 = vsub.s32 0, %v1375
      %v1377 = vrot.slane %v964, %v1376
      %1378 = vrot.lane.b32.xlu0 %v1377, 32
      %v1379 = vpop.permute.xlu0 %1378
      %v1380 = vsel %vm513, %v1379, 0
      %v1383 = vsel %vm513, %v917, 0
      %1385 = vmatprep.subr.mxu0 0.0
      %1386 = vmatpush1.xpose.msra.mxu0 %v1383
      %1387 = vmatprep.subr.mxu0 0.0
      %1388 = vmatpush1.xpose.msra.mxu0 0.0
      %1389 = vmatprep.subr.mxu0 0.0
      %1390 = vmatpush1.xpose.msra.mxu0 0.0
      %1391 = vmatprep.subr.mxu0 0.0
      %1392 = vmatpush1.xpose.msra.mxu0 0.0
      %1393 = vmatprep.subr.mxu0 0.0
      %1394 = vmatpush1.xpose.msra.mxu0 0.0
      %1395 = vmatprep.subr.mxu0 0.0
      %1396 = vmatpush1.xpose.msra.mxu0 0.0
      %1397 = vmatprep.subr.mxu0 0.0
      %1398 = vmatpush1.xpose.msra.mxu0 0.0
      %1399 = vmatprep.subr.mxu0 0.0
      %1400 = vmatpush1.xpose.msra.mxu0 0.0
      %1401 = vmatprep.subr.mxu0 0.0
      %1402 = vmatpush1.xpose.msra.mxu0 0.0
      %1403 = vmatprep.subr.mxu0 0.0
      %1404 = vmatpush1.xpose.msra.mxu0 0.0
      %1405 = vmatprep.subr.mxu0 0.0
      %1406 = vmatpush1.xpose.msra.mxu0 0.0
      %1407 = vmatprep.subr.mxu0 0.0
      %1408 = vmatpush1.xpose.msra.mxu0 0.0
      %1409 = vmatprep.subr.mxu0 0.0
      %1410 = vmatpush1.xpose.msra.mxu0 0.0
      %1411 = vmatprep.subr.mxu0 0.0
      %1412 = vmatpush1.xpose.msra.mxu0 0.0
      %1413 = vmatprep.subr.mxu0 0.0
      %1414 = vmatpush1.xpose.msra.mxu0 0.0
      %1415 = vmatprep.subr.mxu0 0.0
      %1416 = vmatpush1.xpose.msra.mxu0 0.0
      %1417 = vmatprep.subr.mxu0 0.0
      %1418 = vmatpush1.xpose.msra.mxu0 0.0
      %1419 = vmatprep.subr.mxu0 0.0
      %1420 = vmatpush1.xpose.msra.mxu0 0.0
      %1421 = vmatprep.subr.mxu0 0.0
      %1422 = vmatpush1.xpose.msra.mxu0 0.0
      %1423 = vmatprep.subr.mxu0 0.0
      %1424 = vmatpush1.xpose.msra.mxu0 0.0
      %1425 = vmatprep.subr.mxu0 0.0
      %1426 = vmatpush1.xpose.msra.mxu0 0.0
      %1427 = vmatprep.subr.mxu0 0.0
      %1428 = vmatpush1.xpose.msra.mxu0 0.0
      %1429 = vmatprep.subr.mxu0 0.0
      %1430 = vmatpush1.xpose.msra.mxu0 0.0
      %1431 = vmatprep.subr.mxu0 0.0
      %1432 = vmatpush1.xpose.msra.mxu0 0.0
      %1433 = vmatprep.subr.mxu0 0.0
      %1434 = vmatpush1.xpose.msra.mxu0 0.0
      %1435 = vmatprep.subr.mxu0 0.0
      %1436 = vmatpush1.xpose.msra.mxu0 0.0
      %1437 = vmatprep.subr.mxu0 0.0
      %1438 = vmatpush1.xpose.msra.mxu0 0.0
      %1439 = vmatprep.subr.mxu0 0.0
      %1440 = vmatpush1.xpose.msra.mxu0 0.0
      %1441 = vmatprep.subr.mxu0 0.0
      %1442 = vmatpush1.xpose.msra.mxu0 0.0
      %1443 = vmatprep.subr.mxu0 0.0
      %1444 = vmatpush1.xpose.msra.mxu0 0.0
      %1445 = vmatprep.subr.mxu0 0.0
      %1446 = vmatpush1.xpose.msra.mxu0 0.0
      %1447 = vmatprep.subr.mxu0 0.0
      %1448 = vmatpush1.xpose.msra.mxu0 0.0
      %1449 = vmatprep.mubr.f32.mxu0 0.0
      %1450 = vmatmul.mubr.f32.gmra.mrb[0].mxu0 %v1380
      %v1451 = vpop.f32.mrb[0].mxu0
      %v1452 = vadd.f32 0.0, %v1451
      %v1453 = vpop.f32.mrb[0].mxu0
      %1454 = vdwg.mxu0
      %v1455 = vlaneseq
      %v1456 = vshrl.u32 %v1455, 7
      %v1457 = vsub.s32 0, %v1456
      %v1458 = vrot.slane %v966, %v1457
      %1459 = vrot.lane.b32.xlu0 %v1458, 32
      %v1460 = vpop.permute.xlu0 %1459
      %v1461 = vsel %vm513, %v1460, 0
      %v1464 = vsel %vm513, %v918, 0
      %1466 = vmatprep.subr.mxu0 0.0
      %1467 = vmatpush1.xpose.msra.mxu0 %v1464
      %1468 = vmatprep.subr.mxu0 0.0
      %1469 = vmatpush1.xpose.msra.mxu0 0.0
      %1470 = vmatprep.subr.mxu0 0.0
      %1471 = vmatpush1.xpose.msra.mxu0 0.0
      %1472 = vmatprep.subr.mxu0 0.0
      %1473 = vmatpush1.xpose.msra.mxu0 0.0
      %1474 = vmatprep.subr.mxu0 0.0
      %1475 = vmatpush1.xpose.msra.mxu0 0.0
      %1476 = vmatprep.subr.mxu0 0.0
      %1477 = vmatpush1.xpose.msra.mxu0 0.0
      %1478 = vmatprep.subr.mxu0 0.0
      %1479 = vmatpush1.xpose.msra.mxu0 0.0
      %1480 = vmatprep.subr.mxu0 0.0
      %1481 = vmatpush1.xpose.msra.mxu0 0.0
      %1482 = vmatprep.subr.mxu0 0.0
      %1483 = vmatpush1.xpose.msra.mxu0 0.0
      %1484 = vmatprep.subr.mxu0 0.0
      %1485 = vmatpush1.xpose.msra.mxu0 0.0
      %1486 = vmatprep.subr.mxu0 0.0
      %1487 = vmatpush1.xpose.msra.mxu0 0.0
      %1488 = vmatprep.subr.mxu0 0.0
      %1489 = vmatpush1.xpose.msra.mxu0 0.0
      %1490 = vmatprep.subr.mxu0 0.0
      %1491 = vmatpush1.xpose.msra.mxu0 0.0
      %1492 = vmatprep.subr.mxu0 0.0
      %1493 = vmatpush1.xpose.msra.mxu0 0.0
      %1494 = vmatprep.subr.mxu0 0.0
      %1495 = vmatpush1.xpose.msra.mxu0 0.0
      %1496 = vmatprep.subr.mxu0 0.0
      %1497 = vmatpush1.xpose.msra.mxu0 0.0
      %1498 = vmatprep.subr.mxu0 0.0
      %1499 = vmatpush1.xpose.msra.mxu0 0.0
      %1500 = vmatprep.subr.mxu0 0.0
      %1501 = vmatpush1.xpose.msra.mxu0 0.0
      %1502 = vmatprep.subr.mxu0 0.0
      %1503 = vmatpush1.xpose.msra.mxu0 0.0
      %1504 = vmatprep.subr.mxu0 0.0
      %1505 = vmatpush1.xpose.msra.mxu0 0.0
      %1506 = vmatprep.subr.mxu0 0.0
      %1507 = vmatpush1.xpose.msra.mxu0 0.0
      %1508 = vmatprep.subr.mxu0 0.0
      %1509 = vmatpush1.xpose.msra.mxu0 0.0
      %1510 = vmatprep.subr.mxu0 0.0
      %1511 = vmatpush1.xpose.msra.mxu0 0.0
      %1512 = vmatprep.subr.mxu0 0.0
      %1513 = vmatpush1.xpose.msra.mxu0 0.0
      %1514 = vmatprep.subr.mxu0 0.0
      %1515 = vmatpush1.xpose.msra.mxu0 0.0
      %1516 = vmatprep.subr.mxu0 0.0
      %1517 = vmatpush1.xpose.msra.mxu0 0.0
      %1518 = vmatprep.subr.mxu0 0.0
      %1519 = vmatpush1.xpose.msra.mxu0 0.0
      %1520 = vmatprep.subr.mxu0 0.0
      %1521 = vmatpush1.xpose.msra.mxu0 0.0
      %1522 = vmatprep.subr.mxu0 0.0
      %1523 = vmatpush1.xpose.msra.mxu0 0.0
      %1524 = vmatprep.subr.mxu0 0.0
      %1525 = vmatpush1.xpose.msra.mxu0 0.0
      %1526 = vmatprep.subr.mxu0 0.0
      %1527 = vmatpush1.xpose.msra.mxu0 0.0
      %1528 = vmatprep.subr.mxu0 0.0
      %1529 = vmatpush1.xpose.msra.mxu0 0.0
      %1530 = vmatprep.mubr.f32.mxu0 0.0
      %1531 = vmatmul.mubr.f32.gmra.mrb[0].mxu0 %v1461
      %v1532 = vpop.f32.mrb[0].mxu0
      %v1533 = vadd.f32 0.0, %v1532
      %v1534 = vpop.f32.mrb[0].mxu0
      %1535 = vdwg.mxu0
      %v1536 = vlaneseq
      %v1537 = vshrl.u32 %v1536, 7
      %v1538 = vsub.s32 0, %v1537
      %v1539 = vrot.slane %v968, %v1538
      %1540 = vrot.lane.b32.xlu0 %v1539, 32
      %v1541 = vpop.permute.xlu0 %1540
      %v1542 = vsel %vm513, %v1541, 0
      %v1545 = vsel %vm513, %v919, 0
      %1547 = vmatprep.subr.mxu0 0.0
      %1548 = vmatpush1.xpose.msra.mxu0 %v1545
      %1549 = vmatprep.subr.mxu0 0.0
      %1550 = vmatpush1.xpose.msra.mxu0 0.0
      %1551 = vmatprep.subr.mxu0 0.0
      %1552 = vmatpush1.xpose.msra.mxu0 0.0
      %1553 = vmatprep.subr.mxu0 0.0
      %1554 = vmatpush1.xpose.msra.mxu0 0.0
      %1555 = vmatprep.subr.mxu0 0.0
      %1556 = vmatpush1.xpose.msra.mxu0 0.0
      %1557 = vmatprep.subr.mxu0 0.0
      %1558 = vmatpush1.xpose.msra.mxu0 0.0
      %1559 = vmatprep.subr.mxu0 0.0
      %1560 = vmatpush1.xpose.msra.mxu0 0.0
      %1561 = vmatprep.subr.mxu0 0.0
      %1562 = vmatpush1.xpose.msra.mxu0 0.0
      %1563 = vmatprep.subr.mxu0 0.0
      %1564 = vmatpush1.xpose.msra.mxu0 0.0
      %1565 = vmatprep.subr.mxu0 0.0
      %1566 = vmatpush1.xpose.msra.mxu0 0.0
      %1567 = vmatprep.subr.mxu0 0.0
      %1568 = vmatpush1.xpose.msra.mxu0 0.0
      %1569 = vmatprep.subr.mxu0 0.0
      %1570 = vmatpush1.xpose.msra.mxu0 0.0
      %1571 = vmatprep.subr.mxu0 0.0
      %1572 = vmatpush1.xpose.msra.mxu0 0.0
      %1573 = vmatprep.subr.mxu0 0.0
      %1574 = vmatpush1.xpose.msra.mxu0 0.0
      %1575 = vmatprep.subr.mxu0 0.0
      %1576 = vmatpush1.xpose.msra.mxu0 0.0
      %1577 = vmatprep.subr.mxu0 0.0
      %1578 = vmatpush1.xpose.msra.mxu0 0.0
      %1579 = vmatprep.subr.mxu0 0.0
      %1580 = vmatpush1.xpose.msra.mxu0 0.0
      %1581 = vmatprep.subr.mxu0 0.0
      %1582 = vmatpush1.xpose.msra.mxu0 0.0
      %1583 = vmatprep.subr.mxu0 0.0
      %1584 = vmatpush1.xpose.msra.mxu0 0.0
      %1585 = vmatprep.subr.mxu0 0.0
      %1586 = vmatpush1.xpose.msra.mxu0 0.0
      %1587 = vmatprep.subr.mxu0 0.0
      %1588 = vmatpush1.xpose.msra.mxu0 0.0
      %1589 = vmatprep.subr.mxu0 0.0
      %1590 = vmatpush1.xpose.msra.mxu0 0.0
      %1591 = vmatprep.subr.mxu0 0.0
      %1592 = vmatpush1.xpose.msra.mxu0 0.0
      %1593 = vmatprep.subr.mxu0 0.0
      %1594 = vmatpush1.xpose.msra.mxu0 0.0
      %1595 = vmatprep.subr.mxu0 0.0
      %1596 = vmatpush1.xpose.msra.mxu0 0.0
      %1597 = vmatprep.subr.mxu0 0.0
      %1598 = vmatpush1.xpose.msra.mxu0 0.0
      %1599 = vmatprep.subr.mxu0 0.0
      %1600 = vmatpush1.xpose.msra.mxu0 0.0
      %1601 = vmatprep.subr.mxu0 0.0
      %1602 = vmatpush1.xpose.msra.mxu0 0.0
      %1603 = vmatprep.subr.mxu0 0.0
      %1604 = vmatpush1.xpose.msra.mxu0 0.0
      %1605 = vmatprep.subr.mxu0 0.0
      %1606 = vmatpush1.xpose.msra.mxu0 0.0
      %1607 = vmatprep.subr.mxu0 0.0
      %1608 = vmatpush1.xpose.msra.mxu0 0.0
      %1609 = vmatprep.subr.mxu0 0.0
      %1610 = vmatpush1.xpose.msra.mxu0 0.0
      %1611 = vmatprep.mubr.f32.mxu0 0.0
      %1612 = vmatmul.mubr.f32.gmra.mrb[0].mxu0 %v1542
      %v1613 = vpop.f32.mrb[0].mxu0
      %v1614 = vadd.f32 0.0, %v1613
      %v1615 = vpop.f32.mrb[0].mxu0
      %1616 = vdwg.mxu0
      %v1625 = vrot.slane %v1128, 7
      %vm1626 = vcmask 1041409
      %v1627 = vsel %vm1626, %v1625, %v1047
      %v1628 = vrot.slane %v1209, 6
      %vm1629 = vcmask 1042434
      %v1630 = vsel %vm1629, %v1628, %v1627
      %v1631 = vrot.slane %v1290, 5
      %vm1632 = vcmask 1043459
      %v1633 = vsel %vm1632, %v1631, %v1630
      %v1634 = vrot.slane %v1371, 4
      %vm1635 = vcmask 1044484
      %v1636 = vsel %vm1635, %v1634, %v1633
      %v1637 = vrot.slane %v1452, 3
      %vm1638 = vcmask 1045509
      %v1639 = vsel %vm1638, %v1637, %v1636
      %v1640 = vrot.slane %v1533, 2
      %vm1641 = vcmask 1046534
      %v1642 = vsel %vm1641, %v1640, %v1639
      %v1643 = vrot.slane %v1614, 1
      %vm1644 = vcmask 1047559
      %v1645 = vsel %vm1644, %v1643, %v1642
      %vm1647 = vcmask 64512
      %v1648 = vsel %vm1647, %v1645, -inf
      %1649 = vmax.xlane.f32.xlu0 %v1648
      %v1650 = vpop.xlane.xlu0 %1649
      %v1652 = vrot.slane %v1650, 1
      %v1653 = vrot.slane %v1650, 2
      %v1654 = vrot.slane %v1650, 3
      %v1655 = vrot.slane %v1650, 4
      %v1656 = vrot.slane %v1650, 5
      %v1657 = vrot.slane %v1650, 6
      %v1658 = vrot.slane %v1650, 7
      %v1667 = vsub.f32 %v1047, %v1650
      %v1668 = vsub.f32 %v1128, %v1652
      %v1669 = vsub.f32 %v1209, %v1653
      %v1670 = vsub.f32 %v1290, %v1654
      %v1671 = vsub.f32 %v1371, %v1655
      %v1672 = vsub.f32 %v1452, %v1656
      %v1673 = vsub.f32 %v1533, %v1657
      %v1674 = vsub.f32 %v1614, %v1658
      %v1675 = vmul.f32 %v1667, 1.442695
      %v1676 = vpow.pop %v1675
      %v1677 = vmul.f32 %v1668, 1.442695
      %v1678 = vpow.pop %v1677
      %v1679 = vmul.f32 %v1669, 1.442695
      %v1680 = vpow.pop %v1679
      %v1681 = vmul.f32 %v1670, 1.442695
      %v1682 = vpow.pop %v1681
      %v1683 = vmul.f32 %v1671, 1.442695
      %v1684 = vpow.pop %v1683
      %v1685 = vmul.f32 %v1672, 1.442695
      %v1686 = vpow.pop %v1685
      %v1687 = vmul.f32 %v1673, 1.442695
      %v1688 = vpow.pop %v1687
      %v1689 = vmul.f32 %v1674, 1.442695
      %v1690 = vpow.pop %v1689
      %v1699 = vrot.slane %v1678, 7
      %v1700 = vsel %vm1626, %v1699, %v1676
      %v1701 = vrot.slane %v1680, 6
      %v1702 = vsel %vm1629, %v1701, %v1700
      %v1703 = vrot.slane %v1682, 5
      %v1704 = vsel %vm1632, %v1703, %v1702
      %v1705 = vrot.slane %v1684, 4
      %v1706 = vsel %vm1635, %v1705, %v1704
      %v1707 = vrot.slane %v1686, 3
      %v1708 = vsel %vm1638, %v1707, %v1706
      %v1709 = vrot.slane %v1688, 2
      %v1710 = vsel %vm1641, %v1709, %v1708
      %v1711 = vrot.slane %v1690, 1
      %v1712 = vsel %vm1644, %v1711, %v1710
      %v1714 = vsel %vm1647, %v1712, 0.0
      %1715 = vadd.xlane.f32.xlu0 %v1714
      %v1716 = vpop.xlane.xlu0 %1715
      %v1718 = vrot.slane %v1716, 1
      %v1719 = vrot.slane %v1716, 2
      %v1720 = vrot.slane %v1716, 3
      %v1721 = vrot.slane %v1716, 4
      %v1722 = vrot.slane %v1716, 5
      %v1723 = vrot.slane %v1716, 6
      %v1724 = vrot.slane %v1716, 7
      %v1733 = vrcp.pop %v1716
      %v1734 = vmul.f32 %v1676, %v1733
      %v1735 = vrcp.pop %v1718
      %v1736 = vmul.f32 %v1678, %v1735
      %v1737 = vrcp.pop %v1719
      %v1738 = vmul.f32 %v1680, %v1737
      %v1739 = vrcp.pop %v1720
      %v1740 = vmul.f32 %v1682, %v1739
      %v1741 = vrcp.pop %v1721
      %v1742 = vmul.f32 %v1684, %v1741
      %v1743 = vrcp.pop %v1722
      %v1744 = vmul.f32 %v1686, %v1743
      %v1745 = vrcp.pop %v1723
      %v1746 = vmul.f32 %v1688, %v1745
      %v1747 = vrcp.pop %v1724
      %v1748 = vmul.f32 %v1690, %v1747
      %v1750 = vsel %vm1647, %v1734, 0
      %1752 = vmatprep.subr.mxu0 0.0
      %1753 = vmatpush1.msra.mxu0 %v912
      %1754 = vmatprep.subr.mxu0 0.0
      %1755 = vmatpush1.msra.mxu0 0.0
      %1756 = vmatprep.subr.mxu0 0.0
      %1757 = vmatpush1.msra.mxu0 0.0
      %1758 = vmatprep.subr.mxu0 0.0
      %1759 = vmatpush1.msra.mxu0 0.0
      %1760 = vmatprep.subr.mxu0 0.0
      %1761 = vmatpush1.msra.mxu0 0.0
      %1762 = vmatprep.subr.mxu0 0.0
      %1763 = vmatpush1.msra.mxu0 0.0
      %1764 = vmatprep.subr.mxu0 0.0
      %1765 = vmatpush1.msra.mxu0 0.0
      %1766 = vmatprep.subr.mxu0 0.0
      %1767 = vmatpush1.msra.mxu0 0.0
      %1768 = vmatprep.subr.mxu0 0.0
      %1769 = vmatpush1.msra.mxu0 0.0
      %1770 = vmatprep.subr.mxu0 0.0
      %1771 = vmatpush1.msra.mxu0 0.0
      %1772 = vmatprep.subr.mxu0 0.0
      %1773 = vmatpush1.msra.mxu0 0.0
      %1774 = vmatprep.subr.mxu0 0.0
      %1775 = vmatpush1.msra.mxu0 0.0
      %1776 = vmatprep.subr.mxu0 0.0
      %1777 = vmatpush1.msra.mxu0 0.0
      %1778 = vmatprep.subr.mxu0 0.0
      %1779 = vmatpush1.msra.mxu0 0.0
      %1780 = vmatprep.subr.mxu0 0.0
      %1781 = vmatpush1.msra.mxu0 0.0
      %1782 = vmatprep.subr.mxu0 0.0
      %1783 = vmatpush1.msra.mxu0 0.0
      %1784 = vmatprep.subr.mxu0 0.0
      %1785 = vmatpush1.msra.mxu0 0.0
      %1786 = vmatprep.subr.mxu0 0.0
      %1787 = vmatpush1.msra.mxu0 0.0
      %1788 = vmatprep.subr.mxu0 0.0
      %1789 = vmatpush1.msra.mxu0 0.0
      %1790 = vmatprep.subr.mxu0 0.0
      %1791 = vmatpush1.msra.mxu0 0.0
      %1792 = vmatprep.subr.mxu0 0.0
      %1793 = vmatpush1.msra.mxu0 0.0
      %1794 = vmatprep.subr.mxu0 0.0
      %1795 = vmatpush1.msra.mxu0 0.0
      %1796 = vmatprep.subr.mxu0 0.0
      %1797 = vmatpush1.msra.mxu0 0.0
      %1798 = vmatprep.subr.mxu0 0.0
      %1799 = vmatpush1.msra.mxu0 0.0
      %1800 = vmatprep.subr.mxu0 0.0
      %1801 = vmatpush1.msra.mxu0 0.0
      %1802 = vmatprep.subr.mxu0 0.0
      %1803 = vmatpush1.msra.mxu0 0.0
      %1804 = vmatprep.subr.mxu0 0.0
      %1805 = vmatpush1.msra.mxu0 0.0
      %1806 = vmatprep.subr.mxu0 0.0
      %1807 = vmatpush1.msra.mxu0 0.0
      %1808 = vmatprep.subr.mxu0 0.0
      %1809 = vmatpush1.msra.mxu0 0.0
      %1810 = vmatprep.subr.mxu0 0.0
      %1811 = vmatpush1.msra.mxu0 0.0
      %1812 = vmatprep.subr.mxu0 0.0
      %1813 = vmatpush1.msra.mxu0 0.0
      %1814 = vmatprep.subr.mxu0 0.0
      %1815 = vmatpush1.msra.mxu0 0.0
      %1816 = vmatprep.mubr.f32.mxu0 0.0
      %1817 = vmatmul.mubr.f32.gmra.mrb[0].mxu0 %v1750
      %v1818 = vpop.f32.mrb[0].mxu0
      %v1819 = vadd.f32 0.0, %v1818
      %v1820 = vpop.f32.mrb[0].mxu0
      %1821 = vdwg.mxu0
      %v1823 = vsel %vm1647, %v1736, 0
      %1825 = vmatprep.subr.mxu0 0.0
      %1826 = vmatpush1.msra.mxu0 %v913
      %1827 = vmatprep.subr.mxu0 0.0
      %1828 = vmatpush1.msra.mxu0 0.0
      %1829 = vmatprep.subr.mxu0 0.0
      %1830 = vmatpush1.msra.mxu0 0.0
      %1831 = vmatprep.subr.mxu0 0.0
      %1832 = vmatpush1.msra.mxu0 0.0
      %1833 = vmatprep.subr.mxu0 0.0
      %1834 = vmatpush1.msra.mxu0 0.0
      %1835 = vmatprep.subr.mxu0 0.0
      %1836 = vmatpush1.msra.mxu0 0.0
      %1837 = vmatprep.subr.mxu0 0.0
      %1838 = vmatpush1.msra.mxu0 0.0
      %1839 = vmatprep.subr.mxu0 0.0
      %1840 = vmatpush1.msra.mxu0 0.0
      %1841 = vmatprep.subr.mxu0 0.0
      %1842 = vmatpush1.msra.mxu0 0.0
      %1843 = vmatprep.subr.mxu0 0.0
      %1844 = vmatpush1.msra.mxu0 0.0
      %1845 = vmatprep.subr.mxu0 0.0
      %1846 = vmatpush1.msra.mxu0 0.0
      %1847 = vmatprep.subr.mxu0 0.0
      %1848 = vmatpush1.msra.mxu0 0.0
      %1849 = vmatprep.subr.mxu0 0.0
      %1850 = vmatpush1.msra.mxu0 0.0
      %1851 = vmatprep.subr.mxu0 0.0
      %1852 = vmatpush1.msra.mxu0 0.0
      %1853 = vmatprep.subr.mxu0 0.0
      %1854 = vmatpush1.msra.mxu0 0.0
      %1855 = vmatprep.subr.mxu0 0.0
      %1856 = vmatpush1.msra.mxu0 0.0
      %1857 = vmatprep.subr.mxu0 0.0
      %1858 = vmatpush1.msra.mxu0 0.0
      %1859 = vmatprep.subr.mxu0 0.0
      %1860 = vmatpush1.msra.mxu0 0.0
      %1861 = vmatprep.subr.mxu0 0.0
      %1862 = vmatpush1.msra.mxu0 0.0
      %1863 = vmatprep.subr.mxu0 0.0
      %1864 = vmatpush1.msra.mxu0 0.0
      %1865 = vmatprep.subr.mxu0 0.0
      %1866 = vmatpush1.msra.mxu0 0.0
      %1867 = vmatprep.subr.mxu0 0.0
      %1868 = vmatpush1.msra.mxu0 0.0
      %1869 = vmatprep.subr.mxu0 0.0
      %1870 = vmatpush1.msra.mxu0 0.0
      %1871 = vmatprep.subr.mxu0 0.0
      %1872 = vmatpush1.msra.mxu0 0.0
      %1873 = vmatprep.subr.mxu0 0.0
      %1874 = vmatpush1.msra.mxu0 0.0
      %1875 = vmatprep.subr.mxu0 0.0
      %1876 = vmatpush1.msra.mxu0 0.0
      %1877 = vmatprep.subr.mxu0 0.0
      %1878 = vmatpush1.msra.mxu0 0.0
      %1879 = vmatprep.subr.mxu0 0.0
      %1880 = vmatpush1.msra.mxu0 0.0
      %1881 = vmatprep.subr.mxu0 0.0
      %1882 = vmatpush1.msra.mxu0 0.0
      %1883 = vmatprep.subr.mxu0 0.0
      %1884 = vmatpush1.msra.mxu0 0.0
      %1885 = vmatprep.subr.mxu0 0.0
      %1886 = vmatpush1.msra.mxu0 0.0
      %1887 = vmatprep.subr.mxu0 0.0
      %1888 = vmatpush1.msra.mxu0 0.0
      %1889 = vmatprep.mubr.f32.mxu0 0.0
      %1890 = vmatmul.mubr.f32.gmra.mrb[0].mxu0 %v1823
      %v1891 = vpop.f32.mrb[0].mxu0
      %v1892 = vadd.f32 0.0, %v1891
      %v1893 = vpop.f32.mrb[0].mxu0
      %1894 = vdwg.mxu0
      %v1896 = vsel %vm1647, %v1738, 0
      %1898 = vmatprep.subr.mxu0 0.0
      %1899 = vmatpush1.msra.mxu0 %v914
      %1900 = vmatprep.subr.mxu0 0.0
      %1901 = vmatpush1.msra.mxu0 0.0
      %1902 = vmatprep.subr.mxu0 0.0
      %1903 = vmatpush1.msra.mxu0 0.0
      %1904 = vmatprep.subr.mxu0 0.0
      %1905 = vmatpush1.msra.mxu0 0.0
      %1906 = vmatprep.subr.mxu0 0.0
      %1907 = vmatpush1.msra.mxu0 0.0
      %1908 = vmatprep.subr.mxu0 0.0
      %1909 = vmatpush1.msra.mxu0 0.0
      %1910 = vmatprep.subr.mxu0 0.0
      %1911 = vmatpush1.msra.mxu0 0.0
      %1912 = vmatprep.subr.mxu0 0.0
      %1913 = vmatpush1.msra.mxu0 0.0
      %1914 = vmatprep.subr.mxu0 0.0
      %1915 = vmatpush1.msra.mxu0 0.0
      %1916 = vmatprep.subr.mxu0 0.0
      %1917 = vmatpush1.msra.mxu0 0.0
      %1918 = vmatprep.subr.mxu0 0.0
      %1919 = vmatpush1.msra.mxu0 0.0
      %1920 = vmatprep.subr.mxu0 0.0
      %1921 = vmatpush1.msra.mxu0 0.0
      %1922 = vmatprep.subr.mxu0 0.0
      %1923 = vmatpush1.msra.mxu0 0.0
      %1924 = vmatprep.subr.mxu0 0.0
      %1925 = vmatpush1.msra.mxu0 0.0
      %1926 = vmatprep.subr.mxu0 0.0
      %1927 = vmatpush1.msra.mxu0 0.0
      %1928 = vmatprep.subr.mxu0 0.0
      %1929 = vmatpush1.msra.mxu0 0.0
      %1930 = vmatprep.subr.mxu0 0.0
      %1931 = vmatpush1.msra.mxu0 0.0
      %1932 = vmatprep.subr.mxu0 0.0
      %1933 = vmatpush1.msra.mxu0 0.0
      %1934 = vmatprep.subr.mxu0 0.0
      %1935 = vmatpush1.msra.mxu0 0.0
      %1936 = vmatprep.subr.mxu0 0.0
      %1937 = vmatpush1.msra.mxu0 0.0
      %1938 = vmatprep.subr.mxu0 0.0
      %1939 = vmatpush1.msra.mxu0 0.0
      %1940 = vmatprep.subr.mxu0 0.0
      %1941 = vmatpush1.msra.mxu0 0.0
      %1942 = vmatprep.subr.mxu0 0.0
      %1943 = vmatpush1.msra.mxu0 0.0
      %1944 = vmatprep.subr.mxu0 0.0
      %1945 = vmatpush1.msra.mxu0 0.0
      %1946 = vmatprep.subr.mxu0 0.0
      %1947 = vmatpush1.msra.mxu0 0.0
      %1948 = vmatprep.subr.mxu0 0.0
      %1949 = vmatpush1.msra.mxu0 0.0
      %1950 = vmatprep.subr.mxu0 0.0
      %1951 = vmatpush1.msra.mxu0 0.0
      %1952 = vmatprep.subr.mxu0 0.0
      %1953 = vmatpush1.msra.mxu0 0.0
      %1954 = vmatprep.subr.mxu0 0.0
      %1955 = vmatpush1.msra.mxu0 0.0
      %1956 = vmatprep.subr.mxu0 0.0
      %1957 = vmatpush1.msra.mxu0 0.0
      %1958 = vmatprep.subr.mxu0 0.0
      %1959 = vmatpush1.msra.mxu0 0.0
      %1960 = vmatprep.subr.mxu0 0.0
      %1961 = vmatpush1.msra.mxu0 0.0
      %1962 = vmatprep.mubr.f32.mxu0 0.0
      %1963 = vmatmul.mubr.f32.gmra.mrb[0].mxu0 %v1896
      %v1964 = vpop.f32.mrb[0].mxu0
      %v1965 = vadd.f32 0.0, %v1964
      %v1966 = vpop.f32.mrb[0].mxu0
      %1967 = vdwg.mxu0
      %v1969 = vsel %vm1647, %v1740, 0
      %1971 = vmatprep.subr.mxu0 0.0
      %1972 = vmatpush1.msra.mxu0 %v915
      %1973 = vmatprep.subr.mxu0 0.0
      %1974 = vmatpush1.msra.mxu0 0.0
      %1975 = vmatprep.subr.mxu0 0.0
      %1976 = vmatpush1.msra.mxu0 0.0
      %1977 = vmatprep.subr.mxu0 0.0
      %1978 = vmatpush1.msra.mxu0 0.0
      %1979 = vmatprep.subr.mxu0 0.0
      %1980 = vmatpush1.msra.mxu0 0.0
      %1981 = vmatprep.subr.mxu0 0.0
      %1982 = vmatpush1.msra.mxu0 0.0
      %1983 = vmatprep.subr.mxu0 0.0
      %1984 = vmatpush1.msra.mxu0 0.0
      %1985 = vmatprep.subr.mxu0 0.0
      %1986 = vmatpush1.msra.mxu0 0.0
      %1987 = vmatprep.subr.mxu0 0.0
      %1988 = vmatpush1.msra.mxu0 0.0
      %1989 = vmatprep.subr.mxu0 0.0
      %1990 = vmatpush1.msra.mxu0 0.0
      %1991 = vmatprep.subr.mxu0 0.0
      %1992 = vmatpush1.msra.mxu0 0.0
      %1993 = vmatprep.subr.mxu0 0.0
      %1994 = vmatpush1.msra.mxu0 0.0
      %1995 = vmatprep.subr.mxu0 0.0
      %1996 = vmatpush1.msra.mxu0 0.0
      %1997 = vmatprep.subr.mxu0 0.0
      %1998 = vmatpush1.msra.mxu0 0.0
      %1999 = vmatprep.subr.mxu0 0.0
      %2000 = vmatpush1.msra.mxu0 0.0
      %2001 = vmatprep.subr.mxu0 0.0
      %2002 = vmatpush1.msra.mxu0 0.0
      %2003 = vmatprep.subr.mxu0 0.0
      %2004 = vmatpush1.msra.mxu0 0.0
      %2005 = vmatprep.subr.mxu0 0.0
      %2006 = vmatpush1.msra.mxu0 0.0
      %2007 = vmatprep.subr.mxu0 0.0
      %2008 = vmatpush1.msra.mxu0 0.0
      %2009 = vmatprep.subr.mxu0 0.0
      %2010 = vmatpush1.msra.mxu0 0.0
      %2011 = vmatprep.subr.mxu0 0.0
      %2012 = vmatpush1.msra.mxu0 0.0
      %2013 = vmatprep.subr.mxu0 0.0
      %2014 = vmatpush1.msra.mxu0 0.0
      %2015 = vmatprep.subr.mxu0 0.0
      %2016 = vmatpush1.msra.mxu0 0.0
      %2017 = vmatprep.subr.mxu0 0.0
      %2018 = vmatpush1.msra.mxu0 0.0
      %2019 = vmatprep.subr.mxu0 0.0
      %2020 = vmatpush1.msra.mxu0 0.0
      %2021 = vmatprep.subr.mxu0 0.0
      %2022 = vmatpush1.msra.mxu0 0.0
      %2023 = vmatprep.subr.mxu0 0.0
      %2024 = vmatpush1.msra.mxu0 0.0
      %2025 = vmatprep.subr.mxu0 0.0
      %2026 = vmatpush1.msra.mxu0 0.0
      %2027 = vmatprep.subr.mxu0 0.0
      %2028 = vmatpush1.msra.mxu0 0.0
      %2029 = vmatprep.subr.mxu0 0.0
      %2030 = vmatpush1.msra.mxu0 0.0
      %2031 = vmatprep.subr.mxu0 0.0
      %2032 = vmatpush1.msra.mxu0 0.0
      %2033 = vmatprep.subr.mxu0 0.0
      %2034 = vmatpush1.msra.mxu0 0.0
      %2035 = vmatprep.mubr.f32.mxu0 0.0
      %2036 = vmatmul.mubr.f32.gmra.mrb[0].mxu0 %v1969
      %v2037 = vpop.f32.mrb[0].mxu0
      %v2038 = vadd.f32 0.0, %v2037
      %v2039 = vpop.f32.mrb[0].mxu0
      %2040 = vdwg.mxu0
      %v2042 = vsel %vm1647, %v1742, 0
      %2044 = vmatprep.subr.mxu0 0.0
      %2045 = vmatpush1.msra.mxu0 %v916
      %2046 = vmatprep.subr.mxu0 0.0
      %2047 = vmatpush1.msra.mxu0 0.0
      %2048 = vmatprep.subr.mxu0 0.0
      %2049 = vmatpush1.msra.mxu0 0.0
      %2050 = vmatprep.subr.mxu0 0.0
      %2051 = vmatpush1.msra.mxu0 0.0
      %2052 = vmatprep.subr.mxu0 0.0
      %2053 = vmatpush1.msra.mxu0 0.0
      %2054 = vmatprep.subr.mxu0 0.0
      %2055 = vmatpush1.msra.mxu0 0.0
      %2056 = vmatprep.subr.mxu0 0.0
      %2057 = vmatpush1.msra.mxu0 0.0
      %2058 = vmatprep.subr.mxu0 0.0
      %2059 = vmatpush1.msra.mxu0 0.0
      %2060 = vmatprep.subr.mxu0 0.0
      %2061 = vmatpush1.msra.mxu0 0.0
      %2062 = vmatprep.subr.mxu0 0.0
      %2063 = vmatpush1.msra.mxu0 0.0
      %2064 = vmatprep.subr.mxu0 0.0
      %2065 = vmatpush1.msra.mxu0 0.0
      %2066 = vmatprep.subr.mxu0 0.0
      %2067 = vmatpush1.msra.mxu0 0.0
      %2068 = vmatprep.subr.mxu0 0.0
      %2069 = vmatpush1.msra.mxu0 0.0
      %2070 = vmatprep.subr.mxu0 0.0
      %2071 = vmatpush1.msra.mxu0 0.0
      %2072 = vmatprep.subr.mxu0 0.0
      %2073 = vmatpush1.msra.mxu0 0.0
      %2074 = vmatprep.subr.mxu0 0.0
      %2075 = vmatpush1.msra.mxu0 0.0
      %2076 = vmatprep.subr.mxu0 0.0
      %2077 = vmatpush1.msra.mxu0 0.0
      %2078 = vmatprep.subr.mxu0 0.0
      %2079 = vmatpush1.msra.mxu0 0.0
      %2080 = vmatprep.subr.mxu0 0.0
      %2081 = vmatpush1.msra.mxu0 0.0
      %2082 = vmatprep.subr.mxu0 0.0
      %2083 = vmatpush1.msra.mxu0 0.0
      %2084 = vmatprep.subr.mxu0 0.0
      %2085 = vmatpush1.msra.mxu0 0.0
      %2086 = vmatprep.subr.mxu0 0.0
      %2087 = vmatpush1.msra.mxu0 0.0
      %2088 = vmatprep.subr.mxu0 0.0
      %2089 = vmatpush1.msra.mxu0 0.0
      %2090 = vmatprep.subr.mxu0 0.0
      %2091 = vmatpush1.msra.mxu0 0.0
      %2092 = vmatprep.subr.mxu0 0.0
      %2093 = vmatpush1.msra.mxu0 0.0
      %2094 = vmatprep.subr.mxu0 0.0
      %2095 = vmatpush1.msra.mxu0 0.0
      %2096 = vmatprep.subr.mxu0 0.0
      %2097 = vmatpush1.msra.mxu0 0.0
      %2098 = vmatprep.subr.mxu0 0.0
      %2099 = vmatpush1.msra.mxu0 0.0
      %2100 = vmatprep.subr.mxu0 0.0
      %2101 = vmatpush1.msra.mxu0 0.0
      %2102 = vmatprep.subr.mxu0 0.0
      %2103 = vmatpush1.msra.mxu0 0.0
      %2104 = vmatprep.subr.mxu0 0.0
      %2105 = vmatpush1.msra.mxu0 0.0
      %2106 = vmatprep.subr.mxu0 0.0
      %2107 = vmatpush1.msra.mxu0 0.0
      %2108 = vmatprep.mubr.f32.mxu0 0.0
      %2109 = vmatmul.mubr.f32.gmra.mrb[0].mxu0 %v2042
      %v2110 = vpop.f32.mrb[0].mxu0
      %v2111 = vadd.f32 0.0, %v2110
      %v2112 = vpop.f32.mrb[0].mxu0
      %2113 = vdwg.mxu0
      %v2115 = vsel %vm1647, %v1744, 0
      %2117 = vmatprep.subr.mxu0 0.0
      %2118 = vmatpush1.msra.mxu0 %v917
      %2119 = vmatprep.subr.mxu0 0.0
      %2120 = vmatpush1.msra.mxu0 0.0
      %2121 = vmatprep.subr.mxu0 0.0
      %2122 = vmatpush1.msra.mxu0 0.0
      %2123 = vmatprep.subr.mxu0 0.0
      %2124 = vmatpush1.msra.mxu0 0.0
      %2125 = vmatprep.subr.mxu0 0.0
      %2126 = vmatpush1.msra.mxu0 0.0
      %2127 = vmatprep.subr.mxu0 0.0
      %2128 = vmatpush1.msra.mxu0 0.0
      %2129 = vmatprep.subr.mxu0 0.0
      %2130 = vmatpush1.msra.mxu0 0.0
      %2131 = vmatprep.subr.mxu0 0.0
      %2132 = vmatpush1.msra.mxu0 0.0
      %2133 = vmatprep.subr.mxu0 0.0
      %2134 = vmatpush1.msra.mxu0 0.0
      %2135 = vmatprep.subr.mxu0 0.0
      %2136 = vmatpush1.msra.mxu0 0.0
      %2137 = vmatprep.subr.mxu0 0.0
      %2138 = vmatpush1.msra.mxu0 0.0
      %2139 = vmatprep.subr.mxu0 0.0
      %2140 = vmatpush1.msra.mxu0 0.0
      %2141 = vmatprep.subr.mxu0 0.0
      %2142 = vmatpush1.msra.mxu0 0.0
      %2143 = vmatprep.subr.mxu0 0.0
      %2144 = vmatpush1.msra.mxu0 0.0
      %2145 = vmatprep.subr.mxu0 0.0
      %2146 = vmatpush1.msra.mxu0 0.0
      %2147 = vmatprep.subr.mxu0 0.0
      %2148 = vmatpush1.msra.mxu0 0.0
      %2149 = vmatprep.subr.mxu0 0.0
      %2150 = vmatpush1.msra.mxu0 0.0
      %2151 = vmatprep.subr.mxu0 0.0
      %2152 = vmatpush1.msra.mxu0 0.0
      %2153 = vmatprep.subr.mxu0 0.0
      %2154 = vmatpush1.msra.mxu0 0.0
      %2155 = vmatprep.subr.mxu0 0.0
      %2156 = vmatpush1.msra.mxu0 0.0
      %2157 = vmatprep.subr.mxu0 0.0
      %2158 = vmatpush1.msra.mxu0 0.0
      %2159 = vmatprep.subr.mxu0 0.0
      %2160 = vmatpush1.msra.mxu0 0.0
      %2161 = vmatprep.subr.mxu0 0.0
      %2162 = vmatpush1.msra.mxu0 0.0
      %2163 = vmatprep.subr.mxu0 0.0
      %2164 = vmatpush1.msra.mxu0 0.0
      %2165 = vmatprep.subr.mxu0 0.0
      %2166 = vmatpush1.msra.mxu0 0.0
      %2167 = vmatprep.subr.mxu0 0.0
      %2168 = vmatpush1.msra.mxu0 0.0
      %2169 = vmatprep.subr.mxu0 0.0
      %2170 = vmatpush1.msra.mxu0 0.0
      %2171 = vmatprep.subr.mxu0 0.0
      %2172 = vmatpush1.msra.mxu0 0.0
      %2173 = vmatprep.subr.mxu0 0.0
      %2174 = vmatpush1.msra.mxu0 0.0
      %2175 = vmatprep.subr.mxu0 0.0
      %2176 = vmatpush1.msra.mxu0 0.0
      %2177 = vmatprep.subr.mxu0 0.0
      %2178 = vmatpush1.msra.mxu0 0.0
      %2179 = vmatprep.subr.mxu0 0.0
      %2180 = vmatpush1.msra.mxu0 0.0
      %2181 = vmatprep.mubr.f32.mxu0 0.0
      %2182 = vmatmul.mubr.f32.gmra.mrb[0].mxu0 %v2115
      %v2183 = vpop.f32.mrb[0].mxu0
      %v2184 = vadd.f32 0.0, %v2183
      %v2185 = vpop.f32.mrb[0].mxu0
      %2186 = vdwg.mxu0
      %v2188 = vsel %vm1647, %v1746, 0
      %2190 = vmatprep.subr.mxu0 0.0
      %2191 = vmatpush1.msra.mxu0 %v918
      %2192 = vmatprep.subr.mxu0 0.0
      %2193 = vmatpush1.msra.mxu0 0.0
      %2194 = vmatprep.subr.mxu0 0.0
      %2195 = vmatpush1.msra.mxu0 0.0
      %2196 = vmatprep.subr.mxu0 0.0
      %2197 = vmatpush1.msra.mxu0 0.0
      %2198 = vmatprep.subr.mxu0 0.0
      %2199 = vmatpush1.msra.mxu0 0.0
      %2200 = vmatprep.subr.mxu0 0.0
      %2201 = vmatpush1.msra.mxu0 0.0
      %2202 = vmatprep.subr.mxu0 0.0
      %2203 = vmatpush1.msra.mxu0 0.0
      %2204 = vmatprep.subr.mxu0 0.0
      %2205 = vmatpush1.msra.mxu0 0.0
      %2206 = vmatprep.subr.mxu0 0.0
      %2207 = vmatpush1.msra.mxu0 0.0
      %2208 = vmatprep.subr.mxu0 0.0
      %2209 = vmatpush1.msra.mxu0 0.0
      %2210 = vmatprep.subr.mxu0 0.0
      %2211 = vmatpush1.msra.mxu0 0.0
      %2212 = vmatprep.subr.mxu0 0.0
      %2213 = vmatpush1.msra.mxu0 0.0
      %2214 = vmatprep.subr.mxu0 0.0
      %2215 = vmatpush1.msra.mxu0 0.0
      %2216 = vmatprep.subr.mxu0 0.0
      %2217 = vmatpush1.msra.mxu0 0.0
      %2218 = vmatprep.subr.mxu0 0.0
      %2219 = vmatpush1.msra.mxu0 0.0
      %2220 = vmatprep.subr.mxu0 0.0
      %2221 = vmatpush1.msra.mxu0 0.0
      %2222 = vmatprep.subr.mxu0 0.0
      %2223 = vmatpush1.msra.mxu0 0.0
      %2224 = vmatprep.subr.mxu0 0.0
      %2225 = vmatpush1.msra.mxu0 0.0
      %2226 = vmatprep.subr.mxu0 0.0
      %2227 = vmatpush1.msra.mxu0 0.0
      %2228 = vmatprep.subr.mxu0 0.0
      %2229 = vmatpush1.msra.mxu0 0.0
      %2230 = vmatprep.subr.mxu0 0.0
      %2231 = vmatpush1.msra.mxu0 0.0
      %2232 = vmatprep.subr.mxu0 0.0
      %2233 = vmatpush1.msra.mxu0 0.0
      %2234 = vmatprep.subr.mxu0 0.0
      %2235 = vmatpush1.msra.mxu0 0.0
      %2236 = vmatprep.subr.mxu0 0.0
      %2237 = vmatpush1.msra.mxu0 0.0
      %2238 = vmatprep.subr.mxu0 0.0
      %2239 = vmatpush1.msra.mxu0 0.0
      %2240 = vmatprep.subr.mxu0 0.0
      %2241 = vmatpush1.msra.mxu0 0.0
      %2242 = vmatprep.subr.mxu0 0.0
      %2243 = vmatpush1.msra.mxu0 0.0
      %2244 = vmatprep.subr.mxu0 0.0
      %2245 = vmatpush1.msra.mxu0 0.0
      %2246 = vmatprep.subr.mxu0 0.0
      %2247 = vmatpush1.msra.mxu0 0.0
      %2248 = vmatprep.subr.mxu0 0.0
      %2249 = vmatpush1.msra.mxu0 0.0
      %2250 = vmatprep.subr.mxu0 0.0
      %2251 = vmatpush1.msra.mxu0 0.0
      %2252 = vmatprep.subr.mxu0 0.0
      %2253 = vmatpush1.msra.mxu0 0.0
      %2254 = vmatprep.mubr.f32.mxu0 0.0
      %2255 = vmatmul.mubr.f32.gmra.mrb[0].mxu0 %v2188
      %v2256 = vpop.f32.mrb[0].mxu0
      %v2257 = vadd.f32 0.0, %v2256
      %v2258 = vpop.f32.mrb[0].mxu0
      %2259 = vdwg.mxu0
      %v2261 = vsel %vm1647, %v1748, 0
      %2263 = vmatprep.subr.mxu0 0.0
      %2264 = vmatpush1.msra.mxu0 %v919
      %2265 = vmatprep.subr.mxu0 0.0
      %2266 = vmatpush1.msra.mxu0 0.0
      %2267 = vmatprep.subr.mxu0 0.0
      %2268 = vmatpush1.msra.mxu0 0.0
      %2269 = vmatprep.subr.mxu0 0.0
      %2270 = vmatpush1.msra.mxu0 0.0
      %2271 = vmatprep.subr.mxu0 0.0
      %2272 = vmatpush1.msra.mxu0 0.0
      %2273 = vmatprep.subr.mxu0 0.0
      %2274 = vmatpush1.msra.mxu0 0.0
      %2275 = vmatprep.subr.mxu0 0.0
      %2276 = vmatpush1.msra.mxu0 0.0
      %2277 = vmatprep.subr.mxu0 0.0
      %2278 = vmatpush1.msra.mxu0 0.0
      %2279 = vmatprep.subr.mxu0 0.0
      %2280 = vmatpush1.msra.mxu0 0.0
      %2281 = vmatprep.subr.mxu0 0.0
      %2282 = vmatpush1.msra.mxu0 0.0
      %2283 = vmatprep.subr.mxu0 0.0
      %2284 = vmatpush1.msra.mxu0 0.0
      %2285 = vmatprep.subr.mxu0 0.0
      %2286 = vmatpush1.msra.mxu0 0.0
      %2287 = vmatprep.subr.mxu0 0.0
      %2288 = vmatpush1.msra.mxu0 0.0
      %2289 = vmatprep.subr.mxu0 0.0
      %2290 = vmatpush1.msra.mxu0 0.0
      %2291 = vmatprep.subr.mxu0 0.0
      %2292 = vmatpush1.msra.mxu0 0.0
      %2293 = vmatprep.subr.mxu0 0.0
      %2294 = vmatpush1.msra.mxu0 0.0
      %2295 = vmatprep.subr.mxu0 0.0
      %2296 = vmatpush1.msra.mxu0 0.0
      %2297 = vmatprep.subr.mxu0 0.0
      %2298 = vmatpush1.msra.mxu0 0.0
      %2299 = vmatprep.subr.mxu0 0.0
      %2300 = vmatpush1.msra.mxu0 0.0
      %2301 = vmatprep.subr.mxu0 0.0
      %2302 = vmatpush1.msra.mxu0 0.0
      %2303 = vmatprep.subr.mxu0 0.0
      %2304 = vmatpush1.msra.mxu0 0.0
      %2305 = vmatprep.subr.mxu0 0.0
      %2306 = vmatpush1.msra.mxu0 0.0
      %2307 = vmatprep.subr.mxu0 0.0
      %2308 = vmatpush1.msra.mxu0 0.0
      %2309 = vmatprep.subr.mxu0 0.0
      %2310 = vmatpush1.msra.mxu0 0.0
      %2311 = vmatprep.subr.mxu0 0.0
      %2312 = vmatpush1.msra.mxu0 0.0
      %2313 = vmatprep.subr.mxu0 0.0
      %2314 = vmatpush1.msra.mxu0 0.0
      %2315 = vmatprep.subr.mxu0 0.0
      %2316 = vmatpush1.msra.mxu0 0.0
      %2317 = vmatprep.subr.mxu0 0.0
      %2318 = vmatpush1.msra.mxu0 0.0
      %2319 = vmatprep.subr.mxu0 0.0
      %2320 = vmatpush1.msra.mxu0 0.0
      %2321 = vmatprep.subr.mxu0 0.0
      %2322 = vmatpush1.msra.mxu0 0.0
      %2323 = vmatprep.subr.mxu0 0.0
      %2324 = vmatpush1.msra.mxu0 0.0
      %2325 = vmatprep.subr.mxu0 0.0
      %2326 = vmatpush1.msra.mxu0 0.0
      %2327 = vmatprep.mubr.f32.mxu0 0.0
      %2328 = vmatmul.mubr.f32.gmra.mrb[0].mxu0 %v2261
      %v2329 = vpop.f32.mrb[0].mxu0
      %v2330 = vadd.f32 0.0, %v2329
      %v2331 = vpop.f32.mrb[0].mxu0
      %2332 = vdwg.mxu0
      %v2341 = vrot.slane %v1892, 7
      %v2342 = vsel %vm1626, %v2341, %v1819
      %v2343 = vrot.slane %v1965, 6
      %v2344 = vsel %vm1629, %v2343, %v2342
      %v2345 = vrot.slane %v2038, 5
      %v2346 = vsel %vm1632, %v2345, %v2344
      %v2347 = vrot.slane %v2111, 4
      %v2348 = vsel %vm1635, %v2347, %v2346
      %v2349 = vrot.slane %v2184, 3
      %v2350 = vsel %vm1638, %v2349, %v2348
      %v2351 = vrot.slane %v2257, 2
      %v2352 = vsel %vm1641, %v2351, %v2350
      %v2353 = vrot.slane %v2330, 1
      %v2354 = vsel %vm1644, %v2353, %v2352
      %2355 = vrot.lane.b32.xlu0 %v2354, 32
      %v2356 = vpop.permute.xlu0 %2355
      %v2358 = vsel %vm513, %v904, %v2356
      %v2359 = vld [vmem:[%s8] sm:$0xff]
      %v2360 = vld [vmem:[%s8 + $0x8] sm:$0xff]
      %v2361 = vld [vmem:[%s8 + $0x10] sm:$0xff]
      %v2362 = vld [vmem:[%s8 + $0x18] sm:$0xff]
      %v2363 = vld [vmem:[%s8 + $0x20] sm:$0xff]
      %v2364 = vld [vmem:[%s8 + $0x28] sm:$0xff]
      %v2365 = vld [vmem:[%s8 + $0x30] sm:$0xff]
      %v2366 = vld [vmem:[%s8 + $0x38] sm:$0xff]
      %v2367 = vld [vmem:[%s9] sm:$0x1]
      %v2369 = vlaneseq
      %v2370 = vshrl.u32 %v2369, 7
      %v2371 = vsub.s32 0, %v2370
      %v2372 = vrot.slane %v2367, %v2371
      %vm2374 = vcmask 523264
      %v2376 = vsel %vm2374, %v2358, 0
      %2378 = vmatprep.subr.mxu0 0.0
      %2379 = vmatpush1.msra.mxu0 %v2359
      %2380 = vmatprep.subr.mxu0 0.0
      %2381 = vmatpush1.msra.mxu0 %v2360
      %2382 = vmatprep.subr.mxu0 0.0
      %2383 = vmatpush1.msra.mxu0 %v2361
      %2384 = vmatprep.subr.mxu0 0.0
      %2385 = vmatpush1.msra.mxu0 %v2362
      %2386 = vmatprep.subr.mxu0 0.0
      %2387 = vmatpush1.msra.mxu0 %v2363
      %2388 = vmatprep.subr.mxu0 0.0
      %2389 = vmatpush1.msra.mxu0 %v2364
      %2390 = vmatprep.subr.mxu0 0.0
      %2391 = vmatpush1.msra.mxu0 %v2365
      %2392 = vmatprep.subr.mxu0 0.0
      %2393 = vmatpush1.msra.mxu0 %v2366
      %2394 = vmatprep.subr.mxu0 0.0
      %2395 = vmatpush1.msra.mxu0 0.0
      %2396 = vmatprep.subr.mxu0 0.0
      %2397 = vmatpush1.msra.mxu0 0.0
      %2398 = vmatprep.subr.mxu0 0.0
      %2399 = vmatpush1.msra.mxu0 0.0
      %2400 = vmatprep.subr.mxu0 0.0
      %2401 = vmatpush1.msra.mxu0 0.0
      %2402 = vmatprep.subr.mxu0 0.0
      %2403 = vmatpush1.msra.mxu0 0.0
      %2404 = vmatprep.subr.mxu0 0.0
      %2405 = vmatpush1.msra.mxu0 0.0
      %2406 = vmatprep.subr.mxu0 0.0
      %2407 = vmatpush1.msra.mxu0 0.0
      %2408 = vmatprep.subr.mxu0 0.0
      %2409 = vmatpush1.msra.mxu0 0.0
      %2410 = vmatprep.subr.mxu0 0.0
      %2411 = vmatpush1.msra.mxu0 0.0
      %2412 = vmatprep.subr.mxu0 0.0
      %2413 = vmatpush1.msra.mxu0 0.0
      %2414 = vmatprep.subr.mxu0 0.0
      %2415 = vmatpush1.msra.mxu0 0.0
      %2416 = vmatprep.subr.mxu0 0.0
      %2417 = vmatpush1.msra.mxu0 0.0
      %2418 = vmatprep.subr.mxu0 0.0
      %2419 = vmatpush1.msra.mxu0 0.0
      %2420 = vmatprep.subr.mxu0 0.0
      %2421 = vmatpush1.msra.mxu0 0.0
      %2422 = vmatprep.subr.mxu0 0.0
      %2423 = vmatpush1.msra.mxu0 0.0
      %2424 = vmatprep.subr.mxu0 0.0
      %2425 = vmatpush1.msra.mxu0 0.0
      %2426 = vmatprep.subr.mxu0 0.0
      %2427 = vmatpush1.msra.mxu0 0.0
      %2428 = vmatprep.subr.mxu0 0.0
      %2429 = vmatpush1.msra.mxu0 0.0
      %2430 = vmatprep.subr.mxu0 0.0
      %2431 = vmatpush1.msra.mxu0 0.0
      %2432 = vmatprep.subr.mxu0 0.0
      %2433 = vmatpush1.msra.mxu0 0.0
      %2434 = vmatprep.subr.mxu0 0.0
      %2435 = vmatpush1.msra.mxu0 0.0
      %2436 = vmatprep.subr.mxu0 0.0
      %2437 = vmatpush1.msra.mxu0 0.0
      %2438 = vmatprep.subr.mxu0 0.0
      %2439 = vmatpush1.msra.mxu0 0.0
      %2440 = vmatprep.subr.mxu0 0.0
      %2441 = vmatpush1.msra.mxu0 0.0
      %2442 = vmatprep.mubr.f32.mxu0 0.0
      %2443 = vmatmul.mubr.f32.gmra.mrb[0].mxu0 %v2376
      %v2444 = vpop.f32.mrb[0].mxu0
      %v2445 = vadd.f32 %v2372, %v2444
      %v2446 = vpop.f32.mrb[0].mxu0
      %2447 = vdwg.mxu0
      %v2448 = vtanh.pop %v2445
      %v2449 = vld [vmem:[%s10] sm:$0xff]
      %v2450 = vld [vmem:[%s10 + $0x8] sm:$0xff]
      %v2451 = vld [vmem:[%s10 + $0x10] sm:$0xff]
      %v2452 = vld [vmem:[%s10 + $0x18] sm:$0xff]
      %v2453 = vld [vmem:[%s11] sm:$0x1]
      %v2455 = vlaneseq
      %v2456 = vshrl.u32 %v2455, 7
      %v2457 = vsub.s32 0, %v2456
      %v2458 = vrot.slane %v2453, %v2457
      %v2461 = vsel %vm513, %v2448, 0
      %2463 = vmatprep.subr.mxu0 0.0
      %2464 = vmatpush1.msra.mxu0 %v2449
      %2465 = vmatprep.subr.mxu0 0.0
      %2466 = vmatpush1.msra.mxu0 %v2450
      %2467 = vmatprep.subr.mxu0 0.0
      %2468 = vmatpush1.msra.mxu0 %v2451
      %2469 = vmatprep.subr.mxu0 0.0
      %2470 = vmatpush1.msra.mxu0 %v2452
      %2471 = vmatprep.subr.mxu0 0.0
      %2472 = vmatpush1.msra.mxu0 0.0
      %2473 = vmatprep.subr.mxu0 0.0
      %2474 = vmatpush1.msra.mxu0 0.0
      %2475 = vmatprep.subr.mxu0 0.0
      %2476 = vmatpush1.msra.mxu0 0.0
      %2477 = vmatprep.subr.mxu0 0.0
      %2478 = vmatpush1.msra.mxu0 0.0
      %2479 = vmatprep.subr.mxu0 0.0
      %2480 = vmatpush1.msra.mxu0 0.0
      %2481 = vmatprep.subr.mxu0 0.0
      %2482 = vmatpush1.msra.mxu0 0.0
      %2483 = vmatprep.subr.mxu0 0.0
      %2484 = vmatpush1.msra.mxu0 0.0
      %2485 = vmatprep.subr.mxu0 0.0
      %2486 = vmatpush1.msra.mxu0 0.0
      %2487 = vmatprep.subr.mxu0 0.0
      %2488 = vmatpush1.msra.mxu0 0.0
      %2489 = vmatprep.subr.mxu0 0.0
      %2490 = vmatpush1.msra.mxu0 0.0
      %2491 = vmatprep.subr.mxu0 0.0
      %2492 = vmatpush1.msra.mxu0 0.0
      %2493 = vmatprep.subr.mxu0 0.0
      %2494 = vmatpush1.msra.mxu0 0.0
      %2495 = vmatprep.subr.mxu0 0.0
      %2496 = vmatpush1.msra.mxu0 0.0
      %2497 = vmatprep.subr.mxu0 0.0
      %2498 = vmatpush1.msra.mxu0 0.0
      %2499 = vmatprep.subr.mxu0 0.0
      %2500 = vmatpush1.msra.mxu0 0.0
      %2501 = vmatprep.subr.mxu0 0.0
      %2502 = vmatpush1.msra.mxu0 0.0
      %2503 = vmatprep.subr.mxu0 0.0
      %2504 = vmatpush1.msra.mxu0 0.0
      %2505 = vmatprep.subr.mxu0 0.0
      %2506 = vmatpush1.msra.mxu0 0.0
      %2507 = vmatprep.subr.mxu0 0.0
      %2508 = vmatpush1.msra.mxu0 0.0
      %2509 = vmatprep.subr.mxu0 0.0
      %2510 = vmatpush1.msra.mxu0 0.0
      %2511 = vmatprep.subr.mxu0 0.0
      %2512 = vmatpush1.msra.mxu0 0.0
      %2513 = vmatprep.subr.mxu0 0.0
      %2514 = vmatpush1.msra.mxu0 0.0
      %2515 = vmatprep.subr.mxu0 0.0
      %2516 = vmatpush1.msra.mxu0 0.0
      %2517 = vmatprep.subr.mxu0 0.0
      %2518 = vmatpush1.msra.mxu0 0.0
      %2519 = vmatprep.subr.mxu0 0.0
      %2520 = vmatpush1.msra.mxu0 0.0
      %2521 = vmatprep.subr.mxu0 0.0
      %2522 = vmatpush1.msra.mxu0 0.0
      %2523 = vmatprep.subr.mxu0 0.0
      %2524 = vmatpush1.msra.mxu0 0.0
      %2525 = vmatprep.subr.mxu0 0.0
      %2526 = vmatpush1.msra.mxu0 0.0
      %2527 = vmatprep.mubr.f32.mxu0 0.0
      %2528 = vmatmul.mubr.f32.gmra.mrb[0].mxu0 %v2461
      %v2529 = vpop.f32.mrb[0].mxu0
      %v2530 = vadd.f32 %v2458, %v2529
      %v2531 = vpop.f32.mrb[0].mxu0
      %2532 = vdwg.mxu0
      %2533 = vmax.xlane.f32.xlu0 %v2530
      %v2534 = vpop.xlane.xlu0 %2533
      %v2535 = vsub.f32 %v2530, %v2534
      %v2536 = vmul.f32 %v2535, 1.442695
      %v2537 = vpow.pop %v2536
      %2538 = vadd.xlane.f32.xlu0 %v2537
      %v2539 = vpop.xlane.xlu0 %2538
      %v2540 = vlog2.pop %v2539
      %v2541 = vmul.f32 %v2540, 0.6931472
      %v2542 = vadd.f32 %v2541, %v2534
      %v2543 = vsub.f32 %v2530, %v2542
      %v2544 = vrot.slane %v1736, 7
      %v2545 = vsel %vm1626, %v2544, %v1734
      %v2546 = vrot.slane %v1738, 6
      %v2547 = vsel %vm1629, %v2546, %v2545
      %v2548 = vrot.slane %v1740, 5
      %v2549 = vsel %vm1632, %v2548, %v2547
      %v2550 = vrot.slane %v1742, 4
      %v2551 = vsel %vm1635, %v2550, %v2549
      %v2552 = vrot.slane %v1744, 3
      %v2553 = vsel %vm1638, %v2552, %v2551
      %v2554 = vrot.slane %v1746, 2
      %v2555 = vsel %vm1641, %v2554, %v2553
      %v2556 = vrot.slane %v1748, 1
      %v2557 = vsel %vm1644, %v2556, %v2555
      %v2559 = vsel %vm1647, %v2557, 0.0
      %2560 = vst [vmem:[%s422] sm:$0xff] %v2543
      %2561 = vst [vmem:[%s422 + $0x8] sm:$0xff] %v2559
      %p2562 = scmp.lt.s32.totalorder %s32, 3
      %s2563 = scalar_select %p2562, %s32, 3
      %s2564 = smul.addr %s2563, 2
      %s2565 = smul.addr %s2564, 8
      %s2566 = scalar_lea.vmem %s12, %s2565
      // Predicated region
      $region69: #{attn_seq_decoder_steps.1} parent=63 // pred_check
        %p2567 = pneg %p281
      $region70: #{attn_seq_decoder_steps.1} parent=63 // pred_check_branch
        %2569 = sbr.rel (%p2567) target = $region72
      $region71: #{attn_seq_decoder_steps.1} parent=63 // pred_region
        _
      $region72: #{attn_seq_decoder_steps.1} parent=63 // pred_fallthru
        _
      // Predicated region
      $region73: #{attn_seq_decoder_steps.1} parent=63 // pred_check
        %p2570 = pneg %p302
      $region74: #{attn_seq_decoder_steps.1} parent=63 // pred_check_branch
        %2572 = sbr.rel (%p2570) target = $region76
      $region75: #{attn_seq_decoder_steps.1} parent=63 // pred_region
        _
      $region76: #{attn_seq_decoder_steps.1} parent=63 // pred_fallthru
        _
      // Predicated region
      $region77: #{attn_seq_decoder_steps.1} parent=63 // pred_check
        %p2573 = pneg %p323
      $region78: #{attn_seq_decoder_steps.1} parent=63 // pred_check_branch
        %2575 = sbr.rel (%p2573) target = $region80
      $region79: #{attn_seq_decoder_steps.1} parent=63 // pred_region
        _
      $region80: #{attn_seq_decoder_steps.1} parent=63 // pred_fallthru
        _
      // Predicated region
      $region81: #{attn_seq_decoder_steps.1} parent=63 // pred_check
        %p2576 = pneg %p302
      $region82: #{attn_seq_decoder_steps.1} parent=63 // pred_check_branch
        %2578 = sbr.rel (%p2576) target = $region84
      $region83: #{attn_seq_decoder_steps.1} parent=63 // pred_region
        _
      $region84: #{attn_seq_decoder_steps.1} parent=63 // pred_fallthru
        _
      // Predicated region
      $region85: #{attn_seq_decoder_steps.1} parent=63 // pred_check
        %p2579 = pneg %p323
      $region86: #{attn_seq_decoder_steps.1} parent=63 // pred_check_branch
        %2581 = sbr.rel (%p2579) target = $region88
      $region87: #{attn_seq_decoder_steps.1} parent=63 // pred_region
        _
      $region88: #{attn_seq_decoder_steps.1} parent=63 // pred_fallthru
        _
    $region64: #{attn_seq_decoder_steps.1} parent=5 // pred_fallthru
      _
    %p2582 = scmp.le.s32.totalorder 2, %s27
    // Predicated region
    $region89: #{attn_seq_decoder_steps.1} parent=5 // pred_check
      %p2583 = pneg %p2582
    $region90: #{attn_seq_decoder_steps.1} parent=5 // pred_check_branch
      %2585 = sbr.rel (%p2583) target = $region92
    $region91: #{attn_seq_decoder_steps.1} parent=5 // pred_region
      %s2586 = ssub.s32 %s27, 2
      // Predicated region
      $region93: #{attn_seq_decoder_steps.1} parent=91 // pred_check
        %p2587 = pneg %p287
      $region94: #{attn_seq_decoder_steps.1} parent=91 // pred_check_branch
        %2589 = sbr.rel (%p2587) target = $region96
      $region95: #{attn_seq_decoder_steps.1} parent=91 // pred_region
        %p2590 = scmp.lt.s32.totalorder %s33, 3
        %s2591 = scalar_select %p2590, %s33, 3
        %s2592 = smul.addr %s2591, 2
        %s2593 = smul.addr %s2592, 8
        %s2594 = scalar_lea.vmem %s12, %s2593
      $region96: #{attn_seq_decoder_steps.1} parent=91 // pred_fallthru
        _
    $region92: #{attn_seq_decoder_steps.1} parent=5 // pred_fallthru
      _
  $region6: #{attn_seq_decoder_steps.1} parent=0 // loop_footer
    %s31 = sadd.s32 1, %s27
  $region7: #{attn_seq_decoder_steps.1} parent=0 // loop_footer_branch
    %26 = sbr.rel target = $region3
  $region8: #{attn_seq_decoder_steps.1} parent=0 // loop_exit
    _

</llo_original>
